<compile_context>
chip_gen: v7x
topology: tpu7x:2x2x1
jax: 0.10.0
libtpu: 0.0.40
codegen_flags: <defaults>
</compile_context>

<pallas_src>
import functools

import jax
import jax.numpy as jnp
from jax import lax
from jax.experimental import pallas as pl
from jax.experimental.pallas import tpu as pltpu


# ---------------------------------------------------------------------------
# Depthwise 1x1 conv (bias=False) + GlobLN folded into a per-channel affine.
# ---------------------------------------------------------------------------
def _affine_coeffs(rowsum, rowsumsq, n_time, n_chan, w, gamma, beta):
    """Return (a, b) with GlobLN(w * x) == a * x + b  (per-channel a, b).

    Pooled-variance decomposition over per-channel rowsums:
      mu_c  = rowsum_c / T                     (per-channel mean of x)
      ssd_c = rowsumsq_c - rowsum_c * mu_c     (sum_t (x - mu_c)^2)
      mean  = (1/N) sum_c w_c * mu_c
      var   = (1/(N*T)) [ sum_c w_c^2 ssd_c + T sum_c (w_c mu_c - mean)^2 ]
    Cross-channel part is exact; within-channel part is one-pass over only T
    elements per channel (much better conditioned than a global one-pass).
    """
    inv_t = 1.0 / n_time
    inv_total = 1.0 / (n_time * n_chan)
    mu = rowsum * inv_t                                  # (N,1)
    ssd = jnp.maximum(rowsumsq - rowsum * mu, 0.0)       # (N,1)
    wmu = w * mu                                         # (N,1) channel mean of w*x
    mean = jnp.sum(wmu) * (1.0 / n_chan)                 # scalar
    var = (jnp.sum(w * w * ssd)
           + n_time * jnp.sum((wmu - mean) ** 2)) * inv_total
    inv_std = 1.0 / jnp.sqrt(var + 1e-8)                 # GlobLN eps / sqrt path
    a = (gamma * w) * inv_std                            # (N,1)
    b = beta - (gamma * mean) * inv_std                  # (N,1)
    return a, b


# ---------------------------------------------------------------------------
# Fused LA kernel: one batch element per grid step, T processed in chunks.
# ---------------------------------------------------------------------------
def _la_kernel(p_ref, xl_ref, xg_ref, o_ref, *, n_chunks, chunk):
    N = xl_ref.shape[1]
    T = xl_ref.shape[2]
    Tg = xg_ref.shape[2]

    p = p_ref[...].astype(jnp.float32)                   # (N, 9) packed params
    w_l, g_l, b_l = p[:, 0:1], p[:, 1:2], p[:, 2:3]
    w_a, g_a, b_a = p[:, 3:4], p[:, 4:5], p[:, 5:6]
    w_g, g_g, b_g = p[:, 6:7], p[:, 7:8], p[:, 8:9]

    # ---- global branch: x_g is (N, Tg), small -> fully resident.
    # Both global-branch ConvNorms share x_g's rowsum / rowsum-of-squares.
    xg = xg_ref[0].astype(jnp.float32)
    rs_g = jnp.sum(xg, axis=-1, keepdims=True)
    rq_g = jnp.sum(xg * xg, axis=-1, keepdims=True)
    a_act, c_act = _affine_coeffs(rs_g, rq_g, Tg, N, w_a, g_a, b_a)
    a_gf, c_gf = _affine_coeffs(rs_g, rq_g, Tg, N, w_g, g_g, b_g)
    # Sigmoid on the Tg (pre-upsample) columns: commutes with the gather.
    sig = jax.nn.sigmoid(a_act * xg + c_act)             # (N, Tg)
    gf = a_gf * xg + c_gf                                # (N, Tg)

    # ---- local branch stats: per-channel rowsums, accumulated over T chunks.
    def chunk_x(i):                                      # i is a Python int
        return xl_ref[0, :, pl.ds(i * chunk, chunk)].astype(jnp.float32)

    if n_chunks == 1:
        xl0 = chunk_x(0)
        rs_l = jnp.sum(xl0, axis=-1, keepdims=True)
        rq_l = jnp.sum(xl0 * xl0, axis=-1, keepdims=True)
    else:
        rs_l = jnp.zeros((N, 1), jnp.float32)
        rq_l = jnp.zeros((N, 1), jnp.float32)
        for i in range(n_chunks):                        # static loop, static slices
            xc = chunk_x(i)
            rs_l = rs_l + jnp.sum(xc, axis=-1, keepdims=True)
            rq_l = rq_l + jnp.sum(xc * xc, axis=-1, keepdims=True)
    a_l, c_l = _affine_coeffs(rs_l, rq_l, T, N, w_l, g_l, b_l)

    # ---- apply / combine, one T chunk at a time (bounds f32 temporaries).
    def upsampled(col0, tc):
        # F.interpolate(mode='nearest'): src = floor(t * Tg / T), expressed
        # without integer division as  src == k  <=>  k*T <= t*Tg < (k+1)*T.
        dst_tg = (lax.broadcasted_iota(jnp.int32, (Tg, tc), 1) + col0) * Tg
        row_t = lax.broadcasted_iota(jnp.int32, (Tg, tc), 0) * T
        up = ((dst_tg >= row_t) & (dst_tg < row_t + T)).astype(jnp.float32)
        # HIGHEST precision keeps the f32 one-hot gather exact on the MXU.
        sig_up = jnp.dot(sig, up, preferred_element_type=jnp.float32,
                         precision=lax.Precision.HIGHEST)            # (N, tc)
        gf_up = jnp.dot(gf, up, preferred_element_type=jnp.float32,
                        precision=lax.Precision.HIGHEST)             # (N, tc)
        return sig_up, gf_up

    if n_chunks == 1:
        sig_up, gf_up = upsampled(0, T)
        o_ref[0] = ((a_l * xl0 + c_l) * sig_up + gf_up).astype(o_ref.dtype)
    else:
        for i in range(n_chunks):
            xc = chunk_x(i)
            sig_up, gf_up = upsampled(i * chunk, chunk)
            o_ref[0, :, pl.ds(i * chunk, chunk)] = (
                (a_l * xc + c_l) * sig_up + gf_up).astype(o_ref.dtype)


# ---------------------------------------------------------------------------
# Chunk-size heuristic: largest multiple-of-128 divisor of T whose per-chunk
# f32 temporaries fit a ~8 MiB budget; otherwise a single full-T chunk.
# ---------------------------------------------------------------------------
def _pick_t_chunk(N, T, Tg, budget_bytes=8 * 1024 * 1024):
    per_col = (5 * N + 2 * Tg) * 4
    if per_col * T <= budget_bytes:
        return T
    best = None
    for c in range(128, T, 128):
        if T % c == 0 and per_col * c <= budget_bytes:
            best = c
    return best if best is not None else T


# ---------------------------------------------------------------------------
# LA forward
# ---------------------------------------------------------------------------
def la_forward(params, x_l, x_g, *, t_chunk=None):
    """x_l: (B, N, T) local features; x_g: (B, N, Tg) global features.

    params holds nine (N, 1) vectors: depthwise conv weights w_* and GlobLN
    gamma/beta for the local / global_act / global_embedding branches.
    """
    B, N, T = x_l.shape
    Bg, Ng, Tg = x_g.shape
    assert (Bg, Ng) == (B, N)

    # Pack the nine (N,1) param vectors into one resident (N, 9) block.
    p = jnp.concatenate(
        [params["w_local"], params["g_local"], params["b_local"],
         params["w_act"],   params["g_act"],   params["b_act"],
         params["w_glob"],  params["g_glob"],  params["b_glob"]],
        axis=1).astype(jnp.float32)

    chunk = t_chunk if t_chunk is not None else _pick_t_chunk(N, T, Tg)
    assert T % chunk == 0, "t_chunk must divide T"
    n_chunks = T // chunk

    kernel = functools.partial(_la_kernel, n_chunks=n_chunks, chunk=chunk)

    # Raise scoped VMEM above the 16/32 MiB defaults, sized from the actual
    # (double-buffered) blocks + chunked f32 temporaries, with headroom.
    isz_l = jnp.dtype(x_l.dtype).itemsize
    isz_g = jnp.dtype(x_g.dtype).itemsize
    block_bytes = (2 * N * T * isz_l        # x_l, double-buffered
                   + 2 * N * T * isz_l      # out, double-buffered
                   + 2 * N * Tg * isz_g     # x_g, double-buffered
                   + 2 * N * 128 * 4)       # packed params (lane-padded)
    temp_bytes = (5 * N + 2 * Tg) * chunk * 4 + 6 * N * Tg * 4
    vmem_limit = int(min(96 * 2 ** 20,
                         max(int(1.5 * (block_bytes + temp_bytes)),
                             32 * 2 ** 20)))

    return pl.pallas_call(
        kernel,
        out_shape=jax.ShapeDtypeStruct((B, N, T), x_l.dtype),
        grid_spec=pltpu.PrefetchScalarGridSpec(
            num_scalar_prefetch=0,
            grid=(B,),
            in_specs=[
                pl.BlockSpec((N, 9), lambda b: (0, 0)),        # packed params
                pl.BlockSpec((1, N, T), lambda b: (b, 0, 0)),  # x_l
                pl.BlockSpec((1, N, Tg), lambda b: (b, 0, 0)),  # x_g
            ],
            out_specs=pl.BlockSpec((1, N, T), lambda b: (b, 0, 0)),
        ),
        compiler_params=pltpu.CompilerParams(
            dimension_semantics=("parallel",),
            vmem_limit_bytes=vmem_limit,
        ),
    )(p, x_l, x_g)


# ---------------------------------------------------------------------------
# Pure-JAX reference (mirrors the PyTorch module) for a correctness check
# ---------------------------------------------------------------------------
def _ref_convnorm(x, w, gamma, beta):
    y = w[None, :, :] * x                                 # depthwise 1x1 conv
    mean = jnp.mean(y, axis=(1, 2), keepdims=True)
    var = jnp.mean((y - mean) ** 2, axis=(1, 2), keepdims=True)
    normed = (y - mean) / jnp.sqrt(var + 1e-8)
    return gamma[None, :, :] * normed + beta[None, :, :]


def _ref_la(params, x_l, x_g):
    B, N, T = x_l.shape
    Tg = x_g.shape[-1]
    local_feat = _ref_convnorm(x_l, params["w_local"], params["g_local"], params["b_local"])
    global_act = _ref_convnorm(x_g, params["w_act"], params["g_act"], params["b_act"])
    global_feat = _ref_convnorm(x_g, params["w_glob"], params["g_glob"], params["b_glob"])
    idx = (jnp.arange(T, dtype=jnp.int32) * Tg) // T      # nearest: floor(t*Tg/T)
    sig_act = jnp.take(jax.nn.sigmoid(global_act), idx, axis=-1)
    feat_up = jnp.take(global_feat, idx, axis=-1)
    return local_feat * sig_act + feat_up


if __name__ == "__main__":
    key = jax.random.PRNGKey(0)
    B, N, T, Tg = 2, 16, 32, 8

    k_xl, k_xg, k_wl, k_wa, k_wg, k_xl2, k_xg2 = jax.random.split(key, 7)
    x_l = jax.random.normal(k_xl, (B, N, T), dtype=jnp.float32)
    x_g = jax.random.normal(k_xg, (B, N, Tg), dtype=jnp.float32)

    params = {
        # depthwise Conv1d weight [oup, 1, 1] -> stored as (N, 1)
        "w_local": jax.random.normal(k_wl, (N, 1), dtype=jnp.float32) * 0.5,
        "w_act":   jax.random.normal(k_wa, (N, 1), dtype=jnp.float32) * 0.5,
        "w_glob":  jax.random.normal(k_wg, (N, 1), dtype=jnp.float32) * 0.5,
        # GlobLN params: gamma=ones, beta=zeros (PyTorch init)
        "g_local": jnp.ones((N, 1), jnp.float32), "b_local": jnp.zeros((N, 1), jnp.float32),
        "g_act":   jnp.ones((N, 1), jnp.float32), "b_act":   jnp.zeros((N, 1), jnp.float32),
        "g_glob":  jnp.ones((N, 1), jnp.float32), "b_glob":  jnp.zeros((N, 1), jnp.float32),
    }

    # 1) small shape, single T chunk.
    out = jax.block_until_ready(la_forward(params, x_l, x_g))
    ref = _ref_la(params, x_l, x_g)
    assert out.shape == (B, N, T)
    assert jnp.allclose(out, ref, atol=1e-4, rtol=1e-4), "mismatch vs reference"

    # 2) exercise the T-chunked path (v7x VMEM feedback): forced 128-col chunks,
    #    non-power-of-two Tg to hit the general nearest-neighbour indexing.
    T2, Tg2 = 256, 24
    x_l2 = jax.random.normal(k_xl2, (B, N, T2), dtype=jnp.float32)
    x_g2 = jax.random.normal(k_xg2, (B, N, Tg2), dtype=jnp.float32)
    out2 = jax.block_until_ready(la_forward(params, x_l2, x_g2, t_chunk=128))
    ref2 = _ref_la(params, x_l2, x_g2)
    assert out2.shape == (B, N, T2)
    assert jnp.allclose(out2, ref2, atol=1e-4, rtol=1e-4), "mismatch vs reference (chunked)"

    print("KERNEL_OK")
</pallas_src>

<mosaic_0001>
module attributes {stable_mosaic.version = 11 : i64} {
  func.func @_la_kernel(%arg0: i32, %arg1: memref<16x9xf32, #tpu.memory_space<vmem>>, %arg2: memref<1x16x32xf32, #tpu.memory_space<vmem>>, %arg3: memref<1x16x8xf32, #tpu.memory_space<vmem>>, %arg4: memref<1x16x32xf32, #tpu.memory_space<vmem>>) attributes {dimension_semantics = [#tpu.dimension_semantics<parallel>], iteration_bounds = array<i64: 2>, scalar_prefetch = 0 : i64, scratch_operands = 0 : i64, tpu.core_type = #tpu.core_type<tc>, window_params = [{pipeline_mode = #tpu.pipeline_mode<synchronous>, transform_indices = @transform_0, window_bounds = array<i64: 16, 9>}, {transform_indices = @transform_1, window_bounds = array<i64: 1, 16, 32>}, {transform_indices = @transform_2, window_bounds = array<i64: 1, 16, 8>}, {transform_indices = @transform_3, window_bounds = array<i64: 1, 16, 32>}]} {
    %c0 = arith.constant 0 : index
    %c0_0 = arith.constant 0 : index
    %0 = vector.load %arg1[%c0, %c0_0] : memref<16x9xf32, #tpu.memory_space<vmem>>, vector<16x9xf32>
    %1 = vector.extract_strided_slice %0 {offsets = [0, 0], sizes = [16, 1], strides = [1, 1]} : vector<16x9xf32> to vector<16x1xf32>
    %2 = vector.extract_strided_slice %0 {offsets = [0, 1], sizes = [16, 1], strides = [1, 1]} : vector<16x9xf32> to vector<16x1xf32>
    %3 = vector.extract_strided_slice %0 {offsets = [0, 2], sizes = [16, 1], strides = [1, 1]} : vector<16x9xf32> to vector<16x1xf32>
    %4 = vector.extract_strided_slice %0 {offsets = [0, 3], sizes = [16, 1], strides = [1, 1]} : vector<16x9xf32> to vector<16x1xf32>
    %5 = vector.extract_strided_slice %0 {offsets = [0, 4], sizes = [16, 1], strides = [1, 1]} : vector<16x9xf32> to vector<16x1xf32>
    %6 = vector.extract_strided_slice %0 {offsets = [0, 5], sizes = [16, 1], strides = [1, 1]} : vector<16x9xf32> to vector<16x1xf32>
    %7 = vector.extract_strided_slice %0 {offsets = [0, 6], sizes = [16, 1], strides = [1, 1]} : vector<16x9xf32> to vector<16x1xf32>
    %8 = vector.extract_strided_slice %0 {offsets = [0, 7], sizes = [16, 1], strides = [1, 1]} : vector<16x9xf32> to vector<16x1xf32>
    %9 = vector.extract_strided_slice %0 {offsets = [0, 8], sizes = [16, 1], strides = [1, 1]} : vector<16x9xf32> to vector<16x1xf32>
    %c0_1 = arith.constant 0 : index
    %c0_2 = arith.constant 0 : index
    %c0_3 = arith.constant 0 : index
    %10 = vector.load %arg3[%c0_1, %c0_2, %c0_3] : memref<1x16x8xf32, #tpu.memory_space<vmem>>, vector<1x16x8xf32>
    %11 = vector.shape_cast %10 : vector<1x16x8xf32> to vector<16x8xf32>
    %cst = arith.constant dense<0.000000e+00> : vector<16xf32>
    %12 = vector.multi_reduction <add>, %11, %cst [1] : vector<16x8xf32> to vector<16xf32>
    %13 = vector.shape_cast %12 : vector<16xf32> to vector<16x1xf32>
    %14 = arith.mulf %11, %11 : vector<16x8xf32>
    %cst_4 = arith.constant dense<0.000000e+00> : vector<16xf32>
    %15 = vector.multi_reduction <add>, %14, %cst_4 [1] : vector<16x8xf32> to vector<16xf32>
    %16 = vector.shape_cast %15 : vector<16xf32> to vector<16x1xf32>
    %cst_5 = arith.constant 1.250000e-01 : f32
    %17 = vector.broadcast %cst_5 : f32 to vector<16x1xf32>
    %18 = arith.mulf %13, %17 : vector<16x1xf32>
    %19 = arith.mulf %13, %18 : vector<16x1xf32>
    %20 = arith.subf %16, %19 : vector<16x1xf32>
    %cst_6 = arith.constant 0.000000e+00 : f32
    %21 = vector.broadcast %cst_6 : f32 to vector<16x1xf32>
    %22 = arith.maximumf %20, %21 : vector<16x1xf32>
    %23 = arith.mulf %4, %18 : vector<16x1xf32>
    %24 = vector.shape_cast %23 : vector<16x1xf32> to vector<1x16x1xf32>
    %cst_7 = arith.constant dense<0.000000e+00> : vector<1xf32>
    %25 = vector.multi_reduction <add>, %24, %cst_7 [1, 2] : vector<1x16x1xf32> to vector<1xf32>
    %26 = vector.shape_cast %25 : vector<1xf32> to vector<1x1x1xf32>
    %27 = vector.extract %26[0, 0, 0] : f32 from vector<1x1x1xf32>
    %cst_8 = arith.constant 6.250000e-02 : f32
    %28 = arith.mulf %27, %cst_8 : f32
    %29 = arith.mulf %4, %4 : vector<16x1xf32>
    %30 = arith.mulf %29, %22 : vector<16x1xf32>
    %31 = vector.shape_cast %30 : vector<16x1xf32> to vector<1x16x1xf32>
    %cst_9 = arith.constant dense<0.000000e+00> : vector<1xf32>
    %32 = vector.multi_reduction <add>, %31, %cst_9 [1, 2] : vector<1x16x1xf32> to vector<1xf32>
    %33 = vector.shape_cast %32 : vector<1xf32> to vector<1x1x1xf32>
    %34 = vector.extract %33[0, 0, 0] : f32 from vector<1x1x1xf32>
    %35 = vector.broadcast %28 : f32 to vector<16x1xf32>
    %36 = arith.subf %23, %35 : vector<16x1xf32>
    %37 = arith.mulf %36, %36 : vector<16x1xf32>
    %38 = vector.shape_cast %37 : vector<16x1xf32> to vector<1x16x1xf32>
    %cst_10 = arith.constant dense<0.000000e+00> : vector<1xf32>
    %39 = vector.multi_reduction <add>, %38, %cst_10 [1, 2] : vector<1x16x1xf32> to vector<1xf32>
    %40 = vector.shape_cast %39 : vector<1xf32> to vector<1x1x1xf32>
    %41 = vector.extract %40[0, 0, 0] : f32 from vector<1x1x1xf32>
    %cst_11 = arith.constant 8.000000e+00 : f32
    %42 = arith.mulf %cst_11, %41 : f32
    %43 = arith.addf %34, %42 : f32
    %cst_12 = arith.constant 7.812500e-03 : f32
    %44 = arith.mulf %43, %cst_12 : f32
    %cst_13 = arith.constant 9.99999993E-9 : f32
    %45 = arith.addf %44, %cst_13 : f32
    %46 = math.sqrt %45 : f32
    %cst_14 = arith.constant 1.000000e+00 : f32
    %47 = arith.divf %cst_14, %46 : f32
    %48 = arith.mulf %5, %4 : vector<16x1xf32>
    %49 = vector.broadcast %47 : f32 to vector<16x1xf32>
    %50 = arith.mulf %48, %49 : vector<16x1xf32>
    %51 = vector.broadcast %28 : f32 to vector<16x1xf32>
    %52 = arith.mulf %5, %51 : vector<16x1xf32>
    %53 = vector.broadcast %47 : f32 to vector<16x1xf32>
    %54 = arith.mulf %52, %53 : vector<16x1xf32>
    %55 = arith.subf %6, %54 : vector<16x1xf32>
    %cst_15 = arith.constant 1.250000e-01 : f32
    %56 = vector.broadcast %cst_15 : f32 to vector<16x1xf32>
    %57 = arith.mulf %13, %56 : vector<16x1xf32>
    %58 = arith.mulf %13, %57 : vector<16x1xf32>
    %59 = arith.subf %16, %58 : vector<16x1xf32>
    %cst_16 = arith.constant 0.000000e+00 : f32
    %60 = vector.broadcast %cst_16 : f32 to vector<16x1xf32>
    %61 = arith.maximumf %59, %60 : vector<16x1xf32>
    %62 = arith.mulf %7, %57 : vector<16x1xf32>
    %63 = vector.shape_cast %62 : vector<16x1xf32> to vector<1x16x1xf32>
    %cst_17 = arith.constant dense<0.000000e+00> : vector<1xf32>
    %64 = vector.multi_reduction <add>, %63, %cst_17 [1, 2] : vector<1x16x1xf32> to vector<1xf32>
    %65 = vector.shape_cast %64 : vector<1xf32> to vector<1x1x1xf32>
    %66 = vector.extract %65[0, 0, 0] : f32 from vector<1x1x1xf32>
    %cst_18 = arith.constant 6.250000e-02 : f32
    %67 = arith.mulf %66, %cst_18 : f32
    %68 = arith.mulf %7, %7 : vector<16x1xf32>
    %69 = arith.mulf %68, %61 : vector<16x1xf32>
    %70 = vector.shape_cast %69 : vector<16x1xf32> to vector<1x16x1xf32>
    %cst_19 = arith.constant dense<0.000000e+00> : vector<1xf32>
    %71 = vector.multi_reduction <add>, %70, %cst_19 [1, 2] : vector<1x16x1xf32> to vector<1xf32>
    %72 = vector.shape_cast %71 : vector<1xf32> to vector<1x1x1xf32>
    %73 = vector.extract %72[0, 0, 0] : f32 from vector<1x1x1xf32>
    %74 = vector.broadcast %67 : f32 to vector<16x1xf32>
    %75 = arith.subf %62, %74 : vector<16x1xf32>
    %76 = arith.mulf %75, %75 : vector<16x1xf32>
    %77 = vector.shape_cast %76 : vector<16x1xf32> to vector<1x16x1xf32>
    %cst_20 = arith.constant dense<0.000000e+00> : vector<1xf32>
    %78 = vector.multi_reduction <add>, %77, %cst_20 [1, 2] : vector<1x16x1xf32> to vector<1xf32>
    %79 = vector.shape_cast %78 : vector<1xf32> to vector<1x1x1xf32>
    %80 = vector.extract %79[0, 0, 0] : f32 from vector<1x1x1xf32>
    %cst_21 = arith.constant 8.000000e+00 : f32
    %81 = arith.mulf %cst_21, %80 : f32
    %82 = arith.addf %73, %81 : f32
    %cst_22 = arith.constant 7.812500e-03 : f32
    %83 = arith.mulf %82, %cst_22 : f32
    %cst_23 = arith.constant 9.99999993E-9 : f32
    %84 = arith.addf %83, %cst_23 : f32
    %85 = math.sqrt %84 : f32
    %cst_24 = arith.constant 1.000000e+00 : f32
    %86 = arith.divf %cst_24, %85 : f32
    %87 = arith.mulf %8, %7 : vector<16x1xf32>
    %88 = vector.broadcast %86 : f32 to vector<16x1xf32>
    %89 = arith.mulf %87, %88 : vector<16x1xf32>
    %90 = vector.broadcast %67 : f32 to vector<16x1xf32>
    %91 = arith.mulf %8, %90 : vector<16x1xf32>
    %92 = vector.broadcast %86 : f32 to vector<16x1xf32>
    %93 = arith.mulf %91, %92 : vector<16x1xf32>
    %94 = arith.subf %9, %93 : vector<16x1xf32>
    %95 = vector.broadcast %50 : vector<16x1xf32> to vector<16x8xf32>
    %96 = arith.mulf %95, %11 : vector<16x8xf32>
    %97 = vector.broadcast %55 : vector<16x1xf32> to vector<16x8xf32>
    %98 = arith.addf %96, %97 : vector<16x8xf32>
    %99 = arith.negf %98 : vector<16x8xf32>
    %100 = math.exp %99 : vector<16x8xf32>
    %cst_25 = arith.constant 1.000000e+00 : f32
    %101 = vector.broadcast %cst_25 : f32 to vector<16x8xf32>
    %102 = arith.addf %101, %100 : vector<16x8xf32>
    %103 = arith.divf %101, %102 : vector<16x8xf32>
    %104 = vector.broadcast %89 : vector<16x1xf32> to vector<16x8xf32>
    %105 = arith.mulf %104, %11 : vector<16x8xf32>
    %106 = vector.broadcast %94 : vector<16x1xf32> to vector<16x8xf32>
    %107 = arith.addf %105, %106 : vector<16x8xf32>
    %c0_26 = arith.constant 0 : index
    %c0_27 = arith.constant 0 : index
    %c0_28 = arith.constant 0 : index
    %108 = vector.load %arg2[%c0_26, %c0_27, %c0_28] : memref<1x16x32xf32, #tpu.memory_space<vmem>>, vector<1x16x32xf32>
    %109 = vector.shape_cast %108 : vector<1x16x32xf32> to vector<16x32xf32>
    %cst_29 = arith.constant dense<0.000000e+00> : vector<16xf32>
    %110 = vector.multi_reduction <add>, %109, %cst_29 [1] : vector<16x32xf32> to vector<16xf32>
    %111 = vector.shape_cast %110 : vector<16xf32> to vector<16x1xf32>
    %112 = arith.mulf %109, %109 : vector<16x32xf32>
    %cst_30 = arith.constant dense<0.000000e+00> : vector<16xf32>
    %113 = vector.multi_reduction <add>, %112, %cst_30 [1] : vector<16x32xf32> to vector<16xf32>
    %114 = vector.shape_cast %113 : vector<16xf32> to vector<16x1xf32>
    %cst_31 = arith.constant 3.125000e-02 : f32
    %115 = vector.broadcast %cst_31 : f32 to vector<16x1xf32>
    %116 = arith.mulf %111, %115 : vector<16x1xf32>
    %117 = arith.mulf %111, %116 : vector<16x1xf32>
    %118 = arith.subf %114, %117 : vector<16x1xf32>
    %cst_32 = arith.constant 0.000000e+00 : f32
    %119 = vector.broadcast %cst_32 : f32 to vector<16x1xf32>
    %120 = arith.maximumf %118, %119 : vector<16x1xf32>
    %121 = arith.mulf %1, %116 : vector<16x1xf32>
    %122 = vector.shape_cast %121 : vector<16x1xf32> to vector<1x16x1xf32>
    %cst_33 = arith.constant dense<0.000000e+00> : vector<1xf32>
    %123 = vector.multi_reduction <add>, %122, %cst_33 [1, 2] : vector<1x16x1xf32> to vector<1xf32>
    %124 = vector.shape_cast %123 : vector<1xf32> to vector<1x1x1xf32>
    %125 = vector.extract %124[0, 0, 0] : f32 from vector<1x1x1xf32>
    %cst_34 = arith.constant 6.250000e-02 : f32
    %126 = arith.mulf %125, %cst_34 : f32
    %127 = arith.mulf %1, %1 : vector<16x1xf32>
    %128 = arith.mulf %127, %120 : vector<16x1xf32>
    %129 = vector.shape_cast %128 : vector<16x1xf32> to vector<1x16x1xf32>
    %cst_35 = arith.constant dense<0.000000e+00> : vector<1xf32>
    %130 = vector.multi_reduction <add>, %129, %cst_35 [1, 2] : vector<1x16x1xf32> to vector<1xf32>
    %131 = vector.shape_cast %130 : vector<1xf32> to vector<1x1x1xf32>
    %132 = vector.extract %131[0, 0, 0] : f32 from vector<1x1x1xf32>
    %133 = vector.broadcast %126 : f32 to vector<16x1xf32>
    %134 = arith.subf %121, %133 : vector<16x1xf32>
    %135 = arith.mulf %134, %134 : vector<16x1xf32>
    %136 = vector.shape_cast %135 : vector<16x1xf32> to vector<1x16x1xf32>
    %cst_36 = arith.constant dense<0.000000e+00> : vector<1xf32>
    %137 = vector.multi_reduction <add>, %136, %cst_36 [1, 2] : vector<1x16x1xf32> to vector<1xf32>
    %138 = vector.shape_cast %137 : vector<1xf32> to vector<1x1x1xf32>
    %139 = vector.extract %138[0, 0, 0] : f32 from vector<1x1x1xf32>
    %cst_37 = arith.constant 3.200000e+01 : f32
    %140 = arith.mulf %cst_37, %139 : f32
    %141 = arith.addf %132, %140 : f32
    %cst_38 = arith.constant 0.001953125 : f32
    %142 = arith.mulf %141, %cst_38 : f32
    %cst_39 = arith.constant 9.99999993E-9 : f32
    %143 = arith.addf %142, %cst_39 : f32
    %144 = math.sqrt %143 : f32
    %cst_40 = arith.constant 1.000000e+00 : f32
    %145 = arith.divf %cst_40, %144 : f32
    %146 = arith.mulf %2, %1 : vector<16x1xf32>
    %147 = vector.broadcast %145 : f32 to vector<16x1xf32>
    %148 = arith.mulf %146, %147 : vector<16x1xf32>
    %149 = vector.broadcast %126 : f32 to vector<16x1xf32>
    %150 = arith.mulf %2, %149 : vector<16x1xf32>
    %151 = vector.broadcast %145 : f32 to vector<16x1xf32>
    %152 = arith.mulf %150, %151 : vector<16x1xf32>
    %153 = arith.subf %3, %152 : vector<16x1xf32>
    %154 = tpu.iota {dimensions = array<i32: 1>} : vector<8x32xi32>
    %c0_i32 = arith.constant 0 : i32
    %155 = vector.broadcast %c0_i32 : i32 to vector<8x32xi32>
    %156 = arith.addi %154, %155 : vector<8x32xi32>
    %c8_i32 = arith.constant 8 : i32
    %157 = vector.broadcast %c8_i32 : i32 to vector<8x32xi32>
    %158 = arith.muli %156, %157 : vector<8x32xi32>
    %159 = tpu.iota {dimensions = array<i32: 0>} : vector<8x32xi32>
    %c32_i32 = arith.constant 32 : i32
    %160 = vector.broadcast %c32_i32 : i32 to vector<8x32xi32>
    %161 = arith.muli %159, %160 : vector<8x32xi32>
    %162 = arith.cmpi sge, %158, %161 : vector<8x32xi32>
    %c32_i32_41 = arith.constant 32 : i32
    %163 = vector.broadcast %c32_i32_41 : i32 to vector<8x32xi32>
    %164 = arith.addi %161, %163 : vector<8x32xi32>
    %165 = arith.cmpi slt, %158, %164 : vector<8x32xi32>
    %166 = arith.andi %162, %165 : vector<8x32xi1>
    %167 = arith.extui %166 : vector<8x32xi1> to vector<8x32xi32>
    %168 = arith.sitofp %167 : vector<8x32xi32> to vector<8x32xf32>
    %cst_42 = arith.constant dense<0.000000e+00> : vector<16x32xf32>
    %169 = tpu.matmul %103, %168, %cst_42 {dimension_numbers = #tpu.dot_dimension_numbers<[1], [0], [0], [1], [0, 0, 1, 1], [], []>, precision = #tpu.contract_precision<fp32>} : vector<16x8xf32>, vector<8x32xf32>, vector<16x32xf32> -> vector<16x32xf32>
    %cst_43 = arith.constant dense<0.000000e+00> : vector<16x32xf32>
    %170 = tpu.matmul %107, %168, %cst_43 {dimension_numbers = #tpu.dot_dimension_numbers<[1], [0], [0], [1], [0, 0, 1, 1], [], []>, precision = #tpu.contract_precision<fp32>} : vector<16x8xf32>, vector<8x32xf32>, vector<16x32xf32> -> vector<16x32xf32>
    %171 = vector.broadcast %148 : vector<16x1xf32> to vector<16x32xf32>
    %172 = arith.mulf %171, %109 : vector<16x32xf32>
    %173 = vector.broadcast %153 : vector<16x1xf32> to vector<16x32xf32>
    %174 = arith.addf %172, %173 : vector<16x32xf32>
    %175 = arith.mulf %174, %169 : vector<16x32xf32>
    %176 = arith.addf %175, %170 : vector<16x32xf32>
    %c0_44 = arith.constant 0 : index
    %c0_45 = arith.constant 0 : index
    %c0_46 = arith.constant 0 : index
    %177 = vector.load %arg4[%c0_44, %c0_45, %c0_46] : memref<1x16x32xf32, #tpu.memory_space<vmem>>, vector<1x16x32xf32>
    %178 = vector.shape_cast %177 : vector<1x16x32xf32> to vector<16x32xf32>
    %179 = vector.shape_cast %176 : vector<16x32xf32> to vector<1x16x32xf32>
    tpu.vector_store %arg4[%c0_44, %c0_45, %c0_46], %179 {strides = array<i32>} : memref<1x16x32xf32, #tpu.memory_space<vmem>>, vector<1x16x32xf32>,
    return
  }
  func.func @transform_0(%arg0: i32) -> (i32, i32) {
    %c0_i32 = arith.constant 0 : i32
    %c0_i32_0 = arith.constant 0 : i32
    %c0_i32_1 = arith.constant 0 : i32
    return %c0_i32, %c0_i32_0 : i32, i32
  }
  func.func @transform_1(%arg0: i32) -> (i32, i32, i32) {
    %c0_i32 = arith.constant 0 : i32
    %c0_i32_0 = arith.constant 0 : i32
    %c0_i32_1 = arith.constant 0 : i32
    return %arg0, %c0_i32, %c0_i32_0 : i32, i32, i32
  }
  func.func @transform_2(%arg0: i32) -> (i32, i32, i32) {
    %c0_i32 = arith.constant 0 : i32
    %c0_i32_0 = arith.constant 0 : i32
    %c0_i32_1 = arith.constant 0 : i32
    return %arg0, %c0_i32, %c0_i32_0 : i32, i32, i32
  }
  func.func @transform_3(%arg0: i32) -> (i32, i32, i32) {
    %c0_i32 = arith.constant 0 : i32
    %c0_i32_0 = arith.constant 0 : i32
    %c0_i32_1 = arith.constant 0 : i32
    return %arg0, %c0_i32, %c0_i32_0 : i32, i32, i32
  }
}

</mosaic_0001>

<llo_original>
// kernel: tpu_custom_call.1
$region0: #{tpu_custom_call.1}
  #allocation0 [shape = 'u32[]', space=smem, size = 0x4, offset = 0x4, fixed_abs, tag = 'smem constant byte address 0x4 - core index']
  #allocation1 [shape = 'u32[144,128]{1,0:T(1,128)}', space=vmem, size = 0x12000, scoped, tag = 'internal scratch']
  %s0 = inlined_call_operand.vmem [shape: f32[16,9], index: 0, kind: input, shape index: {}]
  %s1 = inlined_call_operand.vmem [shape: f32[2,16,32], index: 1, kind: input, shape index: {}]
  %s2 = inlined_call_operand.vmem [shape: f32[2,16,8], index: 2, kind: input, shape index: {}]
  %s3 = inlined_call_operand.hbm [shape: f32[2,16,32], index: 3, kind: output, shape index: {}]
  %s4 = sld [smem:[#allocation0]]
  $region45: #{tpu_custom_call.1} parent=0
    _
  %s6 = ssub.s32 1, %s4
  %s7 = scalar_select 0, %s6, %s4
  $region1: #{tpu_custom_call.1} parent=0
    #allocation2 [shape = 'u8[16384]{0}', space=vmem, size = 0x4000, scoped, tag = 'output window, operand 0']
    #allocation3 [shape = 's32[2]{0}', space=sflag, size = 0x8, scoped, tag = 'scoped memory for tpu_custom_call.1']
    %8 = vsyncpa [#allocation3], 0
    %s9 = scalar_lea.sflag [#allocation3], 1
    %10 = vsyncpa %s9, 0
    loop: start=0, step=1, limit=4
    $region2: #{tpu_custom_call.1} parent=1 // loop_pre_header
      _
    $region3: #{tpu_custom_call.1} parent=1 // loop_header
      %s12 = sphi 0, %s16
      %p13 = scmp.ge.s32.totalorder %s12, 4
      %s20 = sphi 0, %s20
      %s22 = sphi 0, %s20
      %s23 = sphi 0, %s22
      %s37 = sphi 0, %s23
      %s43 = sphi 0, %s45
      %s46 = sphi 0, %s43
      %s47 = sphi 0, %s46
      %s63 = sphi 0, %s47
      %s69 = sphi 0, %s71
      %s72 = sphi 0, %s69
      %s73 = sphi 0, %s72
      %s89 = sphi 0, %s73
      %s95 = sphi 0, %s97
      %s98 = sphi 0, %s95
      %s99 = sphi 0, %s98
      %s115 = sphi 0, %s99
    $region4: #{tpu_custom_call.1} parent=1 // loop_header_branch
      %15 = sbr.rel (%p13) target = $region8
    $region5: #{tpu_custom_call.1} parent=1 // loop_body
      %s17 = ssub.s32 %s12, 1
      %s18 = ssub.s32 %s12, 2
      %s19 = sadd.s32 %s12, 1
      %s21 = sadd.s32 %s20, 1
      %p24 = scmp.eq.s32.totalorder %s12, 1
      %p25 = scmp.ne.s32.totalorder %s20, %s22
      %p26 = scmp.eq.s32.totalorder %s12, 0
      %p27 = por %p25, %p26
      %p28 = scmp.ne.s32.totalorder %s20, %s22
      %p29 = scmp.eq.s32.totalorder %s17, 1
      %p30 = por %p28, %p29
      %p31 = scmp.ne.s32.totalorder %s22, %s23
      %p32 = scmp.eq.s32.totalorder %s17, 0
      %p33 = por %p31, %p32
      %p34 = scmp.ne.s32.totalorder %s22, %s23
      %p35 = scmp.eq.s32.totalorder %s18, 1
      %p36 = por %p34, %p35
      %p38 = scmp.ne.s32.totalorder %s23, %s37
      %p39 = scmp.eq.s32.totalorder %s18, 0
      %p40 = por %p38, %p39
      %s41 = ssub.s32 %s12, %s19
      %p42 = scmp.eq.s32.totalorder %s41, 0
      %s44 = sadd.s32 %s43, 1
      %s45 = scalar_select %p42, %s43, %s44
      %p48 = pneg %p42
      %p49 = scmp.eq.s32.totalorder %s12, 1
      %p50 = por %p48, %p49
      %p51 = scmp.ne.s32.totalorder %s43, %s46
      %p52 = scmp.eq.s32.totalorder %s12, 0
      %p53 = por %p51, %p52
      %p54 = scmp.ne.s32.totalorder %s43, %s46
      %p55 = scmp.eq.s32.totalorder %s17, 1
      %p56 = por %p54, %p55
      %p57 = scmp.ne.s32.totalorder %s46, %s47
      %p58 = scmp.eq.s32.totalorder %s17, 0
      %p59 = por %p57, %p58
      %p60 = scmp.ne.s32.totalorder %s46, %s47
      %p61 = scmp.eq.s32.totalorder %s18, 1
      %p62 = por %p60, %p61
      %p64 = scmp.ne.s32.totalorder %s47, %s63
      %p65 = scmp.eq.s32.totalorder %s18, 0
      %p66 = por %p64, %p65
      %s67 = ssub.s32 %s12, %s19
      %p68 = scmp.eq.s32.totalorder %s67, 0
      %s70 = sadd.s32 %s69, 1
      %s71 = scalar_select %p68, %s69, %s70
      %p74 = pneg %p68
      %p75 = scmp.eq.s32.totalorder %s12, 1
      %p76 = por %p74, %p75
      %p77 = scmp.ne.s32.totalorder %s69, %s72
      %p78 = scmp.eq.s32.totalorder %s12, 0
      %p79 = por %p77, %p78
      %p80 = scmp.ne.s32.totalorder %s69, %s72
      %p81 = scmp.eq.s32.totalorder %s17, 1
      %p82 = por %p80, %p81
      %p83 = scmp.ne.s32.totalorder %s72, %s73
      %p84 = scmp.eq.s32.totalorder %s17, 0
      %p85 = por %p83, %p84
      %p86 = scmp.ne.s32.totalorder %s72, %s73
      %p87 = scmp.eq.s32.totalorder %s18, 1
      %p88 = por %p86, %p87
      %p90 = scmp.ne.s32.totalorder %s73, %s89
      %p91 = scmp.eq.s32.totalorder %s18, 0
      %p92 = por %p90, %p91
      %s93 = ssub.s32 %s12, %s19
      %p94 = scmp.eq.s32.totalorder %s93, 0
      %s96 = sadd.s32 %s95, 1
      %s97 = scalar_select %p94, %s95, %s96
      %p100 = pneg %p94
      %p101 = scmp.eq.s32.totalorder %s12, 1
      %p102 = por %p100, %p101
      %p103 = scmp.ne.s32.totalorder %s95, %s98
      %p104 = scmp.eq.s32.totalorder %s12, 0
      %p105 = por %p103, %p104
      %p106 = scmp.ne.s32.totalorder %s95, %s98
      %p107 = scmp.eq.s32.totalorder %s17, 1
      %p108 = por %p106, %p107
      %p109 = scmp.ne.s32.totalorder %s98, %s99
      %p110 = scmp.eq.s32.totalorder %s17, 0
      %p111 = por %p109, %p110
      %p112 = scmp.ne.s32.totalorder %s98, %s99
      %p113 = scmp.eq.s32.totalorder %s18, 1
      %p114 = por %p112, %p113
      %p116 = scmp.ne.s32.totalorder %s99, %s115
      %p117 = scmp.eq.s32.totalorder %s18, 0
      %p118 = por %p116, %p117
      %p119 = scmp.le.s32.totalorder 1, %s12
      %p120 = scmp.lt.s32.totalorder %s12, 3
      %p121 = pnand %p119, %p120
      %p122 = pneg %p121
      // Predicated region
      $region9: #{tpu_custom_call.1} parent=5 // pred_check
        _
      $region10: #{tpu_custom_call.1} parent=5 // pred_check_branch
        %124 = sbr.rel (%p121) target = $region12
      $region11: #{tpu_custom_call.1} parent=5 // pred_region
        %s125 = ssub.s32 %s12, 1
        // Predicated region
        $region13: #{tpu_custom_call.1} parent=11 // pred_check
          %p126 = pneg %p33
        $region14: #{tpu_custom_call.1} parent=11 // pred_check_branch
          %128 = sbr.rel (%p126) target = $region16
        $region15: #{tpu_custom_call.1} parent=11 // pred_region
          _
        $region16: #{tpu_custom_call.1} parent=11 // pred_fallthru
          _
      $region12: #{tpu_custom_call.1} parent=5 // pred_fallthru
        _
      %p129 = scmp.lt.s32.totalorder %s12, 2
      // Predicated region
      $region17: #{tpu_custom_call.1} parent=5 // pred_check
        %p130 = pneg %p129
      $region18: #{tpu_custom_call.1} parent=5 // pred_check_branch
        %132 = sbr.rel (%p130) target = $region20
      $region19: #{tpu_custom_call.1} parent=5 // pred_region
        // Predicated region
        $region21: #{tpu_custom_call.1} parent=19 // pred_check
          %p133 = pneg %p53
        $region22: #{tpu_custom_call.1} parent=19 // pred_check_branch
          %135 = sbr.rel (%p133) target = $region24
        $region23: #{tpu_custom_call.1} parent=19 // pred_region
          %p136 = scmp.lt.s32.totalorder %s12, 1
          %s137 = scalar_select %p136, %s12, 1
          %s138 = smul.addr %s137, 2
          %s139 = smul.addr %s138, 8
          %s140 = scalar_lea.vmem %s1, %s139
        $region24: #{tpu_custom_call.1} parent=19 // pred_fallthru
          _
        // Predicated region
        $region25: #{tpu_custom_call.1} parent=19 // pred_check
          %p141 = pneg %p79
        $region26: #{tpu_custom_call.1} parent=19 // pred_check_branch
          %143 = sbr.rel (%p141) target = $region28
        $region27: #{tpu_custom_call.1} parent=19 // pred_region
          %p144 = scmp.lt.s32.totalorder %s12, 1
          %s145 = scalar_select %p144, %s12, 1
          %s146 = smul.addr %s145, 2
          %s147 = smul.addr %s146, 8
          %s148 = scalar_lea.vmem %s2, %s147
        $region28: #{tpu_custom_call.1} parent=19 // pred_fallthru
          _
      $region20: #{tpu_custom_call.1} parent=5 // pred_fallthru
        _
      %p149 = scmp.le.s32.totalorder 1, %s12
      %p150 = scmp.lt.s32.totalorder %s12, 3
      %p151 = pnand %p149, %p150
      %p152 = pneg %p151
      // Predicated region
      $region29: #{tpu_custom_call.1} parent=5 // pred_check
        _
      $region30: #{tpu_custom_call.1} parent=5 // pred_check_branch
        %154 = sbr.rel (%p151) target = $region32
      $region31: #{tpu_custom_call.1} parent=5 // pred_region
        %s155 = ssub.s32 %s12, 1
        %p156 = pneg %p33
        %p157 = pneg %p30
        %p158 = scmp.lt.s32.totalorder %s17, 1
        %s159 = scalar_select %p158, %s17, 1
        %s160 = smul.addr %s159, 2
        %s161 = smul.addr %s160, 8
        %s162 = scalar_lea.vmem %s1, %s161
        %p163 = pneg %p59
        %p164 = pneg %p56
        %p165 = scmp.lt.s32.totalorder %s17, 1
        %s166 = scalar_select %p165, %s17, 1
        %s167 = smul.addr %s166, 2
        %s168 = smul.addr %s167, 8
        %s169 = scalar_lea.vmem %s2, %s168
        %p170 = pneg %p85
        %p171 = pneg %p82
        %p172 = pneg %p111
        %p173 = pneg %p108
        %s174 = sand.u32 %s98, 1
        %s175 = scalar_lea.sflag [#allocation3], %s174
        %s176 = sand.u32 %s98, 1
        %s177 = smul.addr %s176, 16
        %s178 = scalar_lea.vmem [#allocation2], %s177
        %p179 = scmp.lt.s32.totalorder %s17, 1
        %s180 = scalar_select %p179, %s17, 1
        %s181 = smul.addr %s180, 2
        %s182 = smul.addr %s181, 8
        %s183 = scalar_lea.vmem %s1, %s182
        %p184 = scmp.lt.s32.totalorder %s17, 1
        %s185 = scalar_select %p184, %s17, 1
        %s186 = smul.addr %s185, 2
        %s187 = smul.addr %s186, 8
        %s188 = scalar_lea.vmem %s2, %s187
        %v189 = vld [vmem:[%s0] sm:$0xff]
        %v190 = vld [vmem:[%s0 + $0x8] sm:$0xff]
        %v191 = vld [vmem:[%s188] sm:$0xff]
        %v192 = vld [vmem:[%s188 + $0x8] sm:$0xff]
        %vm193 = vcmask 64512
        %v194 = vsel %vm193, %v191, 0.0
        %195 = vadd.xlane.f32.xlu0 %v194
        %v196 = vpop.xlane.xlu0 %195
        %v197 = vsel %vm193, %v192, 0.0
        %198 = vadd.xlane.f32.xlu0 %v197
        %v199 = vpop.xlane.xlu0 %198
        %v200 = vmul.f32 %v191, %v191
        %v201 = vmul.f32 %v192, %v192
        %v202 = vsel %vm193, %v200, 0.0
        %203 = vadd.xlane.f32.xlu0 %v202
        %v204 = vpop.xlane.xlu0 %203
        %v205 = vsel %vm193, %v201, 0.0
        %206 = vadd.xlane.f32.xlu0 %v205
        %v207 = vpop.xlane.xlu0 %206
        %v208 = vmul.f32 %v196, 0.125
        %v209 = vmul.f32 %v199, 0.125
        %v210 = vmul.f32 %v196, %v208
        %v211 = vmul.f32 %v199, %v209
        %v212 = vsub.f32 %v204, %v210
        %v213 = vsub.f32 %v207, %v211
        %v214 = vmax.f32 %v212, 0.0
        %v215 = vmax.f32 %v213, 0.0
        %v216 = vmul.f32 %v189, %v208
        %v217 = vmul.f32 %v190, %v209
        %220 = vrot.lane.b32.xlu0 %v216, 125
        %v221 = vpop.permute.xlu0 %220
        %222 = vrot.lane.b32.xlu0 %v217, 125
        %v223 = vpop.permute.xlu0 %222
        %vm226 = vcmask 7168
        %v227 = vsel %vm226, %v221, 0.0
        %v228 = vsel %vm226, %v223, 0.0
        %v229 = vadd.f32 %v227, %v228
        %230 = vadd.xlane.f32.xlu0 %v229
        %v231 = vpop.xlane.xlu0 %230
        %v232 = vrot.slane %v231, 4
        %v233 = vadd.f32 %v231, %v232
        %v234 = vrot.slane %v233, 2
        %v235 = vadd.f32 %v233, %v234
        %v236 = vrot.slane %v235, 1
        %v237 = vadd.f32 %v235, %v236
        %s238 = vtos %v237
        %s239 = smul.f32 %s238, 0.0625
        %v240 = vmul.f32 %v189, %v189
        %v241 = vmul.f32 %v190, %v190
        %v242 = vmul.f32 %v240, %v214
        %v243 = vmul.f32 %v241, %v215
        %246 = vrot.lane.b32.xlu0 %v242, 125
        %v247 = vpop.permute.xlu0 %246
        %248 = vrot.lane.b32.xlu0 %v243, 125
        %v249 = vpop.permute.xlu0 %248
        %v252 = vsel %vm226, %v247, 0.0
        %v253 = vsel %vm226, %v249, 0.0
        %v254 = vadd.f32 %v252, %v253
        %255 = vadd.xlane.f32.xlu0 %v254
        %v256 = vpop.xlane.xlu0 %255
        %v257 = vrot.slane %v256, 4
        %v258 = vadd.f32 %v256, %v257
        %v259 = vrot.slane %v258, 2
        %v260 = vadd.f32 %v258, %v259
        %v261 = vrot.slane %v260, 1
        %v262 = vadd.f32 %v260, %v261
        %s263 = vtos %v262
        %v264 = vstv %s239
        %v265 = vsub.f32 %v216, %v264
        %v266 = vsub.f32 %v217, %v264
        %v267 = vmul.f32 %v265, %v265
        %v268 = vmul.f32 %v266, %v266
        %271 = vrot.lane.b32.xlu0 %v267, 125
        %v272 = vpop.permute.xlu0 %271
        %273 = vrot.lane.b32.xlu0 %v268, 125
        %v274 = vpop.permute.xlu0 %273
        %v277 = vsel %vm226, %v272, 0.0
        %v278 = vsel %vm226, %v274, 0.0
        %v279 = vadd.f32 %v277, %v278
        %280 = vadd.xlane.f32.xlu0 %v279
        %v281 = vpop.xlane.xlu0 %280
        %v282 = vrot.slane %v281, 4
        %v283 = vadd.f32 %v281, %v282
        %v284 = vrot.slane %v283, 2
        %v285 = vadd.f32 %v283, %v284
        %v286 = vrot.slane %v285, 1
        %v287 = vadd.f32 %v285, %v286
        %s288 = vtos %v287
        %s289 = smul.f32 %s288, 8.0
        %s290 = sadd.f32 %s263, %s289
        %s291 = smul.f32 %s290, 0.0078125
        %s292 = sadd.f32 %s291, 1e-08
        %v293 = vstv %s292
        %v294 = vrsqrt.pop %v293
        %v295 = vmul.f32 %v293, %v294
        %vm296 = vcmp.eq.f32.partialorder %v293, inf
        %v297 = vsel %vm296, %v293, %v295
        %vm298 = vcmp.eq.f32.partialorder %v293, 0.0
        %v299 = vand.u32 %v293, 2147483648
        %v300 = vsel %vm298, %v299, %v297
        %s301 = vtos %v300
        %v302 = vstv %s301
        %v303 = vrcp.pop %v302
        %s304 = vtos %v303
        %307 = vrot.lane.b32.xlu0 %v189, 1
        %v308 = vpop.permute.xlu0 %307
        %309 = vrot.lane.b32.xlu0 %v190, 1
        %v310 = vpop.permute.xlu0 %309
        %v313 = vmul.f32 %v189, %v308
        %v314 = vmul.f32 %v190, %v310
        %v315 = vstv %s304
        %v316 = vmul.f32 %v313, %v315
        %v317 = vmul.f32 %v314, %v315
        %v318 = vmul.f32 %v189, %v264
        %v319 = vmul.f32 %v190, %v264
        %v320 = vmul.f32 %v318, %v315
        %v321 = vmul.f32 %v319, %v315
        %324 = vrot.lane.b32.xlu0 %v320, 1
        %v325 = vpop.permute.xlu0 %324
        %326 = vrot.lane.b32.xlu0 %v321, 1
        %v327 = vpop.permute.xlu0 %326
        %v330 = vsub.f32 %v189, %v325
        %v331 = vsub.f32 %v190, %v327
        %332 = vrot.lane.b32.xlu0 %v216, 122
        %v333 = vpop.permute.xlu0 %332
        %334 = vrot.lane.b32.xlu0 %v217, 122
        %v335 = vpop.permute.xlu0 %334
        %v338 = vsel %vm226, %v333, 0.0
        %v339 = vsel %vm226, %v335, 0.0
        %v340 = vadd.f32 %v338, %v339
        %341 = vadd.xlane.f32.xlu0 %v340
        %v342 = vpop.xlane.xlu0 %341
        %v343 = vrot.slane %v342, 4
        %v344 = vadd.f32 %v342, %v343
        %v345 = vrot.slane %v344, 2
        %v346 = vadd.f32 %v344, %v345
        %v347 = vrot.slane %v346, 1
        %v348 = vadd.f32 %v346, %v347
        %s349 = vtos %v348
        %s350 = smul.f32 %s349, 0.0625
        %351 = vrot.lane.b32.xlu0 %v242, 122
        %v352 = vpop.permute.xlu0 %351
        %353 = vrot.lane.b32.xlu0 %v243, 122
        %v354 = vpop.permute.xlu0 %353
        %v357 = vsel %vm226, %v352, 0.0
        %v358 = vsel %vm226, %v354, 0.0
        %v359 = vadd.f32 %v357, %v358
        %360 = vadd.xlane.f32.xlu0 %v359
        %v361 = vpop.xlane.xlu0 %360
        %v362 = vrot.slane %v361, 4
        %v363 = vadd.f32 %v361, %v362
        %v364 = vrot.slane %v363, 2
        %v365 = vadd.f32 %v363, %v364
        %v366 = vrot.slane %v365, 1
        %v367 = vadd.f32 %v365, %v366
        %s368 = vtos %v367
        %v369 = vstv %s350
        %v370 = vsub.f32 %v216, %v369
        %v371 = vsub.f32 %v217, %v369
        %v372 = vmul.f32 %v370, %v370
        %v373 = vmul.f32 %v371, %v371
        %376 = vrot.lane.b32.xlu0 %v372, 122
        %v377 = vpop.permute.xlu0 %376
        %378 = vrot.lane.b32.xlu0 %v373, 122
        %v379 = vpop.permute.xlu0 %378
        %v382 = vsel %vm226, %v377, 0.0
        %v383 = vsel %vm226, %v379, 0.0
        %v384 = vadd.f32 %v382, %v383
        %385 = vadd.xlane.f32.xlu0 %v384
        %v386 = vpop.xlane.xlu0 %385
        %v387 = vrot.slane %v386, 4
        %v388 = vadd.f32 %v386, %v387
        %v389 = vrot.slane %v388, 2
        %v390 = vadd.f32 %v388, %v389
        %v391 = vrot.slane %v390, 1
        %v392 = vadd.f32 %v390, %v391
        %s393 = vtos %v392
        %s394 = smul.f32 %s393, 8.0
        %s395 = sadd.f32 %s368, %s394
        %s396 = smul.f32 %s395, 0.0078125
        %s397 = sadd.f32 %s396, 1e-08
        %v398 = vstv %s397
        %v399 = vrsqrt.pop %v398
        %v400 = vmul.f32 %v398, %v399
        %vm401 = vcmp.eq.f32.partialorder %v398, inf
        %v402 = vsel %vm401, %v398, %v400
        %vm403 = vcmp.eq.f32.partialorder %v398, 0.0
        %v404 = vand.u32 %v398, 2147483648
        %v405 = vsel %vm403, %v404, %v402
        %s406 = vtos %v405
        %v407 = vstv %s406
        %v408 = vrcp.pop %v407
        %s409 = vtos %v408
        %v410 = vstv %s409
        %v411 = vmul.f32 %v313, %v410
        %v412 = vmul.f32 %v314, %v410
        %v413 = vmul.f32 %v189, %v369
        %v414 = vmul.f32 %v190, %v369
        %v415 = vmul.f32 %v413, %v410
        %v416 = vmul.f32 %v414, %v410
        %419 = vrot.lane.b32.xlu0 %v415, 1
        %v420 = vpop.permute.xlu0 %419
        %421 = vrot.lane.b32.xlu0 %v416, 1
        %v422 = vpop.permute.xlu0 %421
        %v425 = vsub.f32 %v189, %v420
        %v426 = vsub.f32 %v190, %v422
        %428 = vset.pattern.permute.xlu0 4
        %429 = vperm.xlu0 %428, %v316
        %v430 = vpop.permute.xlu0 %429
        %433 = vset.pattern.permute.xlu0 4
        %434 = vperm.xlu0 %433, %v317
        %v435 = vpop.permute.xlu0 %434
        %v437 = vmul.f32 %v430, %v191
        %v438 = vmul.f32 %v435, %v192
        %440 = vset.pattern.permute.xlu0 5
        %441 = vperm.xlu0 %440, %v330
        %v442 = vpop.permute.xlu0 %441
        %445 = vset.pattern.permute.xlu0 5
        %446 = vperm.xlu0 %445, %v331
        %v447 = vpop.permute.xlu0 %446
        %v449 = vadd.f32 %v437, %v442
        %v450 = vadd.f32 %v438, %v447
        %v451 = vxor.u32 %v449, 2147483648
        %v452 = vxor.u32 %v450, 2147483648
        %v453 = vmul.f32 %v451, 1.442695
        %v454 = vpow.pop %v453
        %v455 = vmul.f32 %v452, 1.442695
        %v456 = vpow.pop %v455
        %v457 = vadd.f32 %v454, 1.0
        %v458 = vadd.f32 %v456, 1.0
        %v459 = vrcp.pop %v457
        %v460 = vmul.f32 1.0, %v459
        %v461 = vrcp.pop %v458
        %v462 = vmul.f32 1.0, %v461
        %464 = vset.pattern.permute.xlu0 7
        %465 = vperm.xlu0 %464, %v411
        %v466 = vpop.permute.xlu0 %465
        %469 = vset.pattern.permute.xlu0 7
        %470 = vperm.xlu0 %469, %v412
        %v471 = vpop.permute.xlu0 %470
        %v473 = vmul.f32 %v466, %v191
        %v474 = vmul.f32 %v471, %v192
        %476 = vset.pattern.permute.xlu0 8
        %477 = vperm.xlu0 %476, %v425
        %v478 = vpop.permute.xlu0 %477
        %481 = vset.pattern.permute.xlu0 8
        %482 = vperm.xlu0 %481, %v426
        %v483 = vpop.permute.xlu0 %482
        %v485 = vadd.f32 %v473, %v478
        %v486 = vadd.f32 %v474, %v483
        %v487 = vld [vmem:[%s183] sm:$0xff]
        %v488 = vld [vmem:[%s183 + $0x8] sm:$0xff]
        %vm489 = vcmask 261120
        %v490 = vsel %vm489, %v487, 0.0
        %491 = vadd.xlane.f32.xlu0 %v490
        %v492 = vpop.xlane.xlu0 %491
        %v493 = vsel %vm489, %v488, 0.0
        %494 = vadd.xlane.f32.xlu0 %v493
        %v495 = vpop.xlane.xlu0 %494
        %v496 = vmul.f32 %v487, %v487
        %v497 = vmul.f32 %v488, %v488
        %v498 = vsel %vm489, %v496, 0.0
        %499 = vadd.xlane.f32.xlu0 %v498
        %v500 = vpop.xlane.xlu0 %499
        %v501 = vsel %vm489, %v497, 0.0
        %502 = vadd.xlane.f32.xlu0 %v501
        %v503 = vpop.xlane.xlu0 %502
        %v504 = vmul.f32 %v492, 0.03125
        %v505 = vmul.f32 %v495, 0.03125
        %v506 = vmul.f32 %v492, %v504
        %v507 = vmul.f32 %v495, %v505
        %v508 = vsub.f32 %v500, %v506
        %v509 = vsub.f32 %v503, %v507
        %v510 = vmax.f32 %v508, 0.0
        %v511 = vmax.f32 %v509, 0.0
        %v512 = vmul.f32 %v189, %v504
        %v513 = vmul.f32 %v190, %v505
        %v514 = vsel %vm226, %v512, 0.0
        %v515 = vsel %vm226, %v513, 0.0
        %v516 = vadd.f32 %v514, %v515
        %517 = vadd.xlane.f32.xlu0 %v516
        %v518 = vpop.xlane.xlu0 %517
        %v519 = vrot.slane %v518, 4
        %v520 = vadd.f32 %v518, %v519
        %v521 = vrot.slane %v520, 2
        %v522 = vadd.f32 %v520, %v521
        %v523 = vrot.slane %v522, 1
        %v524 = vadd.f32 %v522, %v523
        %s525 = vtos %v524
        %s526 = smul.f32 %s525, 0.0625
        %v527 = vmul.f32 %v240, %v510
        %v528 = vmul.f32 %v241, %v511
        %v529 = vsel %vm226, %v527, 0.0
        %v530 = vsel %vm226, %v528, 0.0
        %v531 = vadd.f32 %v529, %v530
        %532 = vadd.xlane.f32.xlu0 %v531
        %v533 = vpop.xlane.xlu0 %532
        %v534 = vrot.slane %v533, 4
        %v535 = vadd.f32 %v533, %v534
        %v536 = vrot.slane %v535, 2
        %v537 = vadd.f32 %v535, %v536
        %v538 = vrot.slane %v537, 1
        %v539 = vadd.f32 %v537, %v538
        %s540 = vtos %v539
        %v541 = vstv %s526
        %v542 = vsub.f32 %v512, %v541
        %v543 = vsub.f32 %v513, %v541
        %v544 = vmul.f32 %v542, %v542
        %v545 = vmul.f32 %v543, %v543
        %v546 = vsel %vm226, %v544, 0.0
        %v547 = vsel %vm226, %v545, 0.0
        %v548 = vadd.f32 %v546, %v547
        %549 = vadd.xlane.f32.xlu0 %v548
        %v550 = vpop.xlane.xlu0 %549
        %v551 = vrot.slane %v550, 4
        %v552 = vadd.f32 %v550, %v551
        %v553 = vrot.slane %v552, 2
        %v554 = vadd.f32 %v552, %v553
        %v555 = vrot.slane %v554, 1
        %v556 = vadd.f32 %v554, %v555
        %s557 = vtos %v556
        %s558 = smul.f32 %s557, 32.0
        %s559 = sadd.f32 %s540, %s558
        %s560 = smul.f32 %s559, 0.001953125
        %s561 = sadd.f32 %s560, 1e-08
        %v562 = vstv %s561
        %v563 = vrsqrt.pop %v562
        %v564 = vmul.f32 %v562, %v563
        %vm565 = vcmp.eq.f32.partialorder %v562, inf
        %v566 = vsel %vm565, %v562, %v564
        %vm567 = vcmp.eq.f32.partialorder %v562, 0.0
        %v568 = vand.u32 %v562, 2147483648
        %v569 = vsel %vm567, %v568, %v566
        %s570 = vtos %v569
        %v571 = vstv %s570
        %v572 = vrcp.pop %v571
        %s573 = vtos %v572
        %v574 = vstv %s573
        %v575 = vmul.f32 %v313, %v574
        %v576 = vmul.f32 %v314, %v574
        %v577 = vmul.f32 %v189, %v541
        %v578 = vmul.f32 %v190, %v541
        %v579 = vmul.f32 %v577, %v574
        %v580 = vmul.f32 %v578, %v574
        %583 = vrot.lane.b32.xlu0 %v579, 1
        %v584 = vpop.permute.xlu0 %583
        %585 = vrot.lane.b32.xlu0 %v580, 1
        %v586 = vpop.permute.xlu0 %585
        %v589 = vsub.f32 %v189, %v584
        %v590 = vsub.f32 %v190, %v586
        %v591 = vlaneseq
        %v592 = vand.u32 %v591, 127
        %v593 = vmul.u32 %v592, 8
        %v594 = vlaneseq
        %v595 = vshrl.u32 %v594, 7
        %v596 = vmul.u32 %v595, 32
        %vm597 = vcmp.ge.s32.totalorder %v593, %v596
        %v598 = vadd.s32 %v596, 32
        %vm599 = vcmp.lt.s32.totalorder %v593, %v598
        %vm600 = vmand %vm597, %vm599
        %v601 = vsel %vm600, 1, 0
        %v602 = vcvt.s32.f32 %v601
        %v604 = vsel %vm193, %v460, 0
        %v607 = vsel %vm193, %v462, 0
        %609 = vmatprep.subr.mxu0 0.0
        %v610 = vand.u32 %v602, 4294901760
        %611 = vmatpush1.msra.mxu0 %v610
        %612 = vmatprep.subr.mxu0 0.0
        %613 = vmatpush1.msra.mxu0 0.0
        %614 = vmatprep.subr.mxu0 0.0
        %615 = vmatpush1.msra.mxu0 0.0
        %616 = vmatprep.subr.mxu0 0.0
        %617 = vmatpush1.msra.mxu0 0.0
        %618 = vmatprep.subr.mxu0 0.0
        %619 = vmatpush1.msra.mxu0 0.0
        %620 = vmatprep.subr.mxu0 0.0
        %621 = vmatpush1.msra.mxu0 0.0
        %622 = vmatprep.subr.mxu0 0.0
        %623 = vmatpush1.msra.mxu0 0.0
        %624 = vmatprep.subr.mxu0 0.0
        %625 = vmatpush1.msra.mxu0 0.0
        %626 = vmatprep.subr.mxu0 0.0
        %627 = vmatpush1.msra.mxu0 0.0
        %628 = vmatprep.subr.mxu0 0.0
        %629 = vmatpush1.msra.mxu0 0.0
        %630 = vmatprep.subr.mxu0 0.0
        %631 = vmatpush1.msra.mxu0 0.0
        %632 = vmatprep.subr.mxu0 0.0
        %633 = vmatpush1.msra.mxu0 0.0
        %634 = vmatprep.subr.mxu0 0.0
        %635 = vmatpush1.msra.mxu0 0.0
        %636 = vmatprep.subr.mxu0 0.0
        %637 = vmatpush1.msra.mxu0 0.0
        %638 = vmatprep.subr.mxu0 0.0
        %639 = vmatpush1.msra.mxu0 0.0
        %640 = vmatprep.subr.mxu0 0.0
        %641 = vmatpush1.msra.mxu0 0.0
        %642 = vmatprep.subr.mxu0 0.0
        %643 = vmatpush1.msra.mxu0 0.0
        %644 = vmatprep.subr.mxu0 0.0
        %645 = vmatpush1.msra.mxu0 0.0
        %646 = vmatprep.subr.mxu0 0.0
        %647 = vmatpush1.msra.mxu0 0.0
        %648 = vmatprep.subr.mxu0 0.0
        %649 = vmatpush1.msra.mxu0 0.0
        %650 = vmatprep.subr.mxu0 0.0
        %651 = vmatpush1.msra.mxu0 0.0
        %652 = vmatprep.subr.mxu0 0.0
        %653 = vmatpush1.msra.mxu0 0.0
        %654 = vmatprep.subr.mxu0 0.0
        %655 = vmatpush1.msra.mxu0 0.0
        %656 = vmatprep.subr.mxu0 0.0
        %657 = vmatpush1.msra.mxu0 0.0
        %658 = vmatprep.subr.mxu0 0.0
        %659 = vmatpush1.msra.mxu0 0.0
        %660 = vmatprep.subr.mxu0 0.0
        %661 = vmatpush1.msra.mxu0 0.0
        %662 = vmatprep.subr.mxu0 0.0
        %663 = vmatpush1.msra.mxu0 0.0
        %664 = vmatprep.subr.mxu0 0.0
        %665 = vmatpush1.msra.mxu0 0.0
        %666 = vmatprep.subr.mxu0 0.0
        %667 = vmatpush1.msra.mxu0 0.0
        %668 = vmatprep.subr.mxu0 0.0
        %669 = vmatpush1.msra.mxu0 0.0
        %670 = vmatprep.subr.mxu0 0.0
        %671 = vmatpush1.msra.mxu0 0.0
        %672 = vmatprep.subr.mxu0 0.0
        %673 = vmatpush1.msra.mxu0 0.0
        %674 = vmatprep.mubr.f32.mxu0 0.0
        %v675 = vand.u32 %v604, 4294901760
        %v676 = vsub.f32 %v604, %v675
        %v677 = vand.u32 %v676, 4294901760
        %v678 = vsub.f32 %v676, %v677
        %v679 = vand.u32 %v678, 4294901760
        %680 = vmatmul.mubr.f32.gmra.mrb[0].mxu0 %v679
        %v681 = vpop.f32.mrb[0].mxu0
        %v682 = vadd.f32 0.0, %v681
        %v683 = vpop.f32.mrb[0].mxu0
        %684 = vmatprep.mubr.f32.mxu0 0.0
        %v685 = vand.u32 %v607, 4294901760
        %v686 = vsub.f32 %v607, %v685
        %v687 = vand.u32 %v686, 4294901760
        %v688 = vsub.f32 %v686, %v687
        %v689 = vand.u32 %v688, 4294901760
        %690 = vmatmul.mubr.f32.gmra.mrb[0].mxu0 %v689
        %v691 = vpop.f32.mrb[0].mxu0
        %v692 = vadd.f32 0.0, %v691
        %v693 = vpop.f32.mrb[0].mxu0
        %694 = vdwg.mxu0
        %695 = vmatprep.subr.mxu0 0.0
        %v696 = vand.u32 %v602, 4294901760
        %v697 = vsub.f32 %v602, %v696
        %v698 = vand.u32 %v697, 4294901760
        %v699 = vsub.f32 %v697, %v698
        %v700 = vand.u32 %v699, 4294901760
        %701 = vmatpush1.msra.mxu0 %v700
        %702 = vmatprep.subr.mxu0 0.0
        %703 = vmatpush1.msra.mxu0 0.0
        %704 = vmatprep.subr.mxu0 0.0
        %705 = vmatpush1.msra.mxu0 0.0
        %706 = vmatprep.subr.mxu0 0.0
        %707 = vmatpush1.msra.mxu0 0.0
        %708 = vmatprep.subr.mxu0 0.0
        %709 = vmatpush1.msra.mxu0 0.0
        %710 = vmatprep.subr.mxu0 0.0
        %711 = vmatpush1.msra.mxu0 0.0
        %712 = vmatprep.subr.mxu0 0.0
        %713 = vmatpush1.msra.mxu0 0.0
        %714 = vmatprep.subr.mxu0 0.0
        %715 = vmatpush1.msra.mxu0 0.0
        %716 = vmatprep.subr.mxu0 0.0
        %717 = vmatpush1.msra.mxu0 0.0
        %718 = vmatprep.subr.mxu0 0.0
        %719 = vmatpush1.msra.mxu0 0.0
        %720 = vmatprep.subr.mxu0 0.0
        %721 = vmatpush1.msra.mxu0 0.0
        %722 = vmatprep.subr.mxu0 0.0
        %723 = vmatpush1.msra.mxu0 0.0
        %724 = vmatprep.subr.mxu0 0.0
        %725 = vmatpush1.msra.mxu0 0.0
        %726 = vmatprep.subr.mxu0 0.0
        %727 = vmatpush1.msra.mxu0 0.0
        %728 = vmatprep.subr.mxu0 0.0
        %729 = vmatpush1.msra.mxu0 0.0
        %730 = vmatprep.subr.mxu0 0.0
        %731 = vmatpush1.msra.mxu0 0.0
        %732 = vmatprep.subr.mxu0 0.0
        %733 = vmatpush1.msra.mxu0 0.0
        %734 = vmatprep.subr.mxu0 0.0
        %735 = vmatpush1.msra.mxu0 0.0
        %736 = vmatprep.subr.mxu0 0.0
        %737 = vmatpush1.msra.mxu0 0.0
        %738 = vmatprep.subr.mxu0 0.0
        %739 = vmatpush1.msra.mxu0 0.0
        %740 = vmatprep.subr.mxu0 0.0
        %741 = vmatpush1.msra.mxu0 0.0
        %742 = vmatprep.subr.mxu0 0.0
        %743 = vmatpush1.msra.mxu0 0.0
        %744 = vmatprep.subr.mxu0 0.0
        %745 = vmatpush1.msra.mxu0 0.0
        %746 = vmatprep.subr.mxu0 0.0
        %747 = vmatpush1.msra.mxu0 0.0
        %748 = vmatprep.subr.mxu0 0.0
        %749 = vmatpush1.msra.mxu0 0.0
        %750 = vmatprep.subr.mxu0 0.0
        %751 = vmatpush1.msra.mxu0 0.0
        %752 = vmatprep.subr.mxu0 0.0
        %753 = vmatpush1.msra.mxu0 0.0
        %754 = vmatprep.subr.mxu0 0.0
        %755 = vmatpush1.msra.mxu0 0.0
        %756 = vmatprep.subr.mxu0 0.0
        %757 = vmatpush1.msra.mxu0 0.0
        %758 = vmatprep.subr.mxu0 0.0
        %759 = vmatpush1.msra.mxu0 0.0
        %760 = vmatprep.subr.mxu0 0.0
        %761 = vmatpush1.msra.mxu0 0.0
        %762 = vmatprep.subr.mxu0 0.0
        %763 = vmatpush1.msra.mxu0 0.0
        %764 = vmatprep.mubr.f32.mxu0 0.0
        %v765 = vand.u32 %v604, 4294901760
        %766 = vmatmul.mubr.f32.gmra.mrb[0].mxu0 %v765
        %v767 = vpop.f32.mrb[0].mxu0
        %v768 = vadd.f32 %v682, %v767
        %v769 = vpop.f32.mrb[0].mxu0
        %770 = vmatprep.mubr.f32.mxu0 0.0
        %v771 = vand.u32 %v607, 4294901760
        %772 = vmatmul.mubr.f32.gmra.mrb[0].mxu0 %v771
        %v773 = vpop.f32.mrb[0].mxu0
        %v774 = vadd.f32 %v692, %v773
        %v775 = vpop.f32.mrb[0].mxu0
        %776 = vdwg.mxu0
        %777 = vmatprep.subr.mxu0 0.0
        %v778 = vand.u32 %v602, 4294901760
        %v779 = vsub.f32 %v602, %v778
        %780 = vmatpush1.msra.mxu0 %v779
        %781 = vmatprep.subr.mxu0 0.0
        %782 = vmatpush1.msra.mxu0 0.0
        %783 = vmatprep.subr.mxu0 0.0
        %784 = vmatpush1.msra.mxu0 0.0
        %785 = vmatprep.subr.mxu0 0.0
        %786 = vmatpush1.msra.mxu0 0.0
        %787 = vmatprep.subr.mxu0 0.0
        %788 = vmatpush1.msra.mxu0 0.0
        %789 = vmatprep.subr.mxu0 0.0
        %790 = vmatpush1.msra.mxu0 0.0
        %791 = vmatprep.subr.mxu0 0.0
        %792 = vmatpush1.msra.mxu0 0.0
        %793 = vmatprep.subr.mxu0 0.0
        %794 = vmatpush1.msra.mxu0 0.0
        %795 = vmatprep.subr.mxu0 0.0
        %796 = vmatpush1.msra.mxu0 0.0
        %797 = vmatprep.subr.mxu0 0.0
        %798 = vmatpush1.msra.mxu0 0.0
        %799 = vmatprep.subr.mxu0 0.0
        %800 = vmatpush1.msra.mxu0 0.0
        %801 = vmatprep.subr.mxu0 0.0
        %802 = vmatpush1.msra.mxu0 0.0
        %803 = vmatprep.subr.mxu0 0.0
        %804 = vmatpush1.msra.mxu0 0.0
        %805 = vmatprep.subr.mxu0 0.0
        %806 = vmatpush1.msra.mxu0 0.0
        %807 = vmatprep.subr.mxu0 0.0
        %808 = vmatpush1.msra.mxu0 0.0
        %809 = vmatprep.subr.mxu0 0.0
        %810 = vmatpush1.msra.mxu0 0.0
        %811 = vmatprep.subr.mxu0 0.0
        %812 = vmatpush1.msra.mxu0 0.0
        %813 = vmatprep.subr.mxu0 0.0
        %814 = vmatpush1.msra.mxu0 0.0
        %815 = vmatprep.subr.mxu0 0.0
        %816 = vmatpush1.msra.mxu0 0.0
        %817 = vmatprep.subr.mxu0 0.0
        %818 = vmatpush1.msra.mxu0 0.0
        %819 = vmatprep.subr.mxu0 0.0
        %820 = vmatpush1.msra.mxu0 0.0
        %821 = vmatprep.subr.mxu0 0.0
        %822 = vmatpush1.msra.mxu0 0.0
        %823 = vmatprep.subr.mxu0 0.0
        %824 = vmatpush1.msra.mxu0 0.0
        %825 = vmatprep.subr.mxu0 0.0
        %826 = vmatpush1.msra.mxu0 0.0
        %827 = vmatprep.subr.mxu0 0.0
        %828 = vmatpush1.msra.mxu0 0.0
        %829 = vmatprep.subr.mxu0 0.0
        %830 = vmatpush1.msra.mxu0 0.0
        %831 = vmatprep.subr.mxu0 0.0
        %832 = vmatpush1.msra.mxu0 0.0
        %833 = vmatprep.subr.mxu0 0.0
        %834 = vmatpush1.msra.mxu0 0.0
        %835 = vmatprep.subr.mxu0 0.0
        %836 = vmatpush1.msra.mxu0 0.0
        %837 = vmatprep.subr.mxu0 0.0
        %838 = vmatpush1.msra.mxu0 0.0
        %839 = vmatprep.subr.mxu0 0.0
        %840 = vmatpush1.msra.mxu0 0.0
        %841 = vmatprep.subr.mxu0 0.0
        %842 = vmatpush1.msra.mxu0 0.0
        %843 = vmatprep.mubr.f32.mxu0 0.0
        %v844 = vand.u32 %v604, 4294901760
        %v845 = vsub.f32 %v604, %v844
        %846 = vmatmul.mubr.f32.gmra.mrb[0].mxu0 %v845
        %v847 = vpop.f32.mrb[0].mxu0
        %v848 = vadd.f32 %v768, %v847
        %v849 = vpop.f32.mrb[0].mxu0
        %850 = vmatprep.mubr.f32.mxu0 0.0
        %v851 = vand.u32 %v607, 4294901760
        %v852 = vsub.f32 %v607, %v851
        %853 = vmatmul.mubr.f32.gmra.mrb[0].mxu0 %v852
        %v854 = vpop.f32.mrb[0].mxu0
        %v855 = vadd.f32 %v774, %v854
        %v856 = vpop.f32.mrb[0].mxu0
        %857 = vdwg.mxu0
        %858 = vmatprep.subr.mxu0 0.0
        %v859 = vand.u32 %v602, 4294901760
        %860 = vmatpush1.msra.mxu0 %v859
        %861 = vmatprep.subr.mxu0 0.0
        %862 = vmatpush1.msra.mxu0 0.0
        %863 = vmatprep.subr.mxu0 0.0
        %864 = vmatpush1.msra.mxu0 0.0
        %865 = vmatprep.subr.mxu0 0.0
        %866 = vmatpush1.msra.mxu0 0.0
        %867 = vmatprep.subr.mxu0 0.0
        %868 = vmatpush1.msra.mxu0 0.0
        %869 = vmatprep.subr.mxu0 0.0
        %870 = vmatpush1.msra.mxu0 0.0
        %871 = vmatprep.subr.mxu0 0.0
        %872 = vmatpush1.msra.mxu0 0.0
        %873 = vmatprep.subr.mxu0 0.0
        %874 = vmatpush1.msra.mxu0 0.0
        %875 = vmatprep.subr.mxu0 0.0
        %876 = vmatpush1.msra.mxu0 0.0
        %877 = vmatprep.subr.mxu0 0.0
        %878 = vmatpush1.msra.mxu0 0.0
        %879 = vmatprep.subr.mxu0 0.0
        %880 = vmatpush1.msra.mxu0 0.0
        %881 = vmatprep.subr.mxu0 0.0
        %882 = vmatpush1.msra.mxu0 0.0
        %883 = vmatprep.subr.mxu0 0.0
        %884 = vmatpush1.msra.mxu0 0.0
        %885 = vmatprep.subr.mxu0 0.0
        %886 = vmatpush1.msra.mxu0 0.0
        %887 = vmatprep.subr.mxu0 0.0
        %888 = vmatpush1.msra.mxu0 0.0
        %889 = vmatprep.subr.mxu0 0.0
        %890 = vmatpush1.msra.mxu0 0.0
        %891 = vmatprep.subr.mxu0 0.0
        %892 = vmatpush1.msra.mxu0 0.0
        %893 = vmatprep.subr.mxu0 0.0
        %894 = vmatpush1.msra.mxu0 0.0
        %895 = vmatprep.subr.mxu0 0.0
        %896 = vmatpush1.msra.mxu0 0.0
        %897 = vmatprep.subr.mxu0 0.0
        %898 = vmatpush1.msra.mxu0 0.0
        %899 = vmatprep.subr.mxu0 0.0
        %900 = vmatpush1.msra.mxu0 0.0
        %901 = vmatprep.subr.mxu0 0.0
        %902 = vmatpush1.msra.mxu0 0.0
        %903 = vmatprep.subr.mxu0 0.0
        %904 = vmatpush1.msra.mxu0 0.0
        %905 = vmatprep.subr.mxu0 0.0
        %906 = vmatpush1.msra.mxu0 0.0
        %907 = vmatprep.subr.mxu0 0.0
        %908 = vmatpush1.msra.mxu0 0.0
        %909 = vmatprep.subr.mxu0 0.0
        %910 = vmatpush1.msra.mxu0 0.0
        %911 = vmatprep.subr.mxu0 0.0
        %912 = vmatpush1.msra.mxu0 0.0
        %913 = vmatprep.subr.mxu0 0.0
        %914 = vmatpush1.msra.mxu0 0.0
        %915 = vmatprep.subr.mxu0 0.0
        %916 = vmatpush1.msra.mxu0 0.0
        %917 = vmatprep.subr.mxu0 0.0
        %918 = vmatpush1.msra.mxu0 0.0
        %919 = vmatprep.subr.mxu0 0.0
        %920 = vmatpush1.msra.mxu0 0.0
        %921 = vmatprep.subr.mxu0 0.0
        %922 = vmatpush1.msra.mxu0 0.0
        %923 = vmatprep.mubr.f32.mxu0 0.0
        %v924 = vand.u32 %v604, 4294901760
        %v925 = vsub.f32 %v604, %v924
        %v926 = vand.u32 %v925, 4294901760
        %927 = vmatmul.mubr.f32.gmra.mrb[0].mxu0 %v926
        %v928 = vpop.f32.mrb[0].mxu0
        %v929 = vadd.f32 %v848, %v928
        %v930 = vpop.f32.mrb[0].mxu0
        %931 = vmatprep.mubr.f32.mxu0 0.0
        %v932 = vand.u32 %v607, 4294901760
        %v933 = vsub.f32 %v607, %v932
        %v934 = vand.u32 %v933, 4294901760
        %935 = vmatmul.mubr.f32.gmra.mrb[0].mxu0 %v934
        %v936 = vpop.f32.mrb[0].mxu0
        %v937 = vadd.f32 %v855, %v936
        %v938 = vpop.f32.mrb[0].mxu0
        %939 = vdwg.mxu0
        %940 = vmatprep.subr.mxu0 0.0
        %v941 = vand.u32 %v602, 4294901760
        %v942 = vsub.f32 %v602, %v941
        %v943 = vand.u32 %v942, 4294901760
        %944 = vmatpush1.msra.mxu0 %v943
        %945 = vmatprep.subr.mxu0 0.0
        %946 = vmatpush1.msra.mxu0 0.0
        %947 = vmatprep.subr.mxu0 0.0
        %948 = vmatpush1.msra.mxu0 0.0
        %949 = vmatprep.subr.mxu0 0.0
        %950 = vmatpush1.msra.mxu0 0.0
        %951 = vmatprep.subr.mxu0 0.0
        %952 = vmatpush1.msra.mxu0 0.0
        %953 = vmatprep.subr.mxu0 0.0
        %954 = vmatpush1.msra.mxu0 0.0
        %955 = vmatprep.subr.mxu0 0.0
        %956 = vmatpush1.msra.mxu0 0.0
        %957 = vmatprep.subr.mxu0 0.0
        %958 = vmatpush1.msra.mxu0 0.0
        %959 = vmatprep.subr.mxu0 0.0
        %960 = vmatpush1.msra.mxu0 0.0
        %961 = vmatprep.subr.mxu0 0.0
        %962 = vmatpush1.msra.mxu0 0.0
        %963 = vmatprep.subr.mxu0 0.0
        %964 = vmatpush1.msra.mxu0 0.0
        %965 = vmatprep.subr.mxu0 0.0
        %966 = vmatpush1.msra.mxu0 0.0
        %967 = vmatprep.subr.mxu0 0.0
        %968 = vmatpush1.msra.mxu0 0.0
        %969 = vmatprep.subr.mxu0 0.0
        %970 = vmatpush1.msra.mxu0 0.0
        %971 = vmatprep.subr.mxu0 0.0
        %972 = vmatpush1.msra.mxu0 0.0
        %973 = vmatprep.subr.mxu0 0.0
        %974 = vmatpush1.msra.mxu0 0.0
        %975 = vmatprep.subr.mxu0 0.0
        %976 = vmatpush1.msra.mxu0 0.0
        %977 = vmatprep.subr.mxu0 0.0
        %978 = vmatpush1.msra.mxu0 0.0
        %979 = vmatprep.subr.mxu0 0.0
        %980 = vmatpush1.msra.mxu0 0.0
        %981 = vmatprep.subr.mxu0 0.0
        %982 = vmatpush1.msra.mxu0 0.0
        %983 = vmatprep.subr.mxu0 0.0
        %984 = vmatpush1.msra.mxu0 0.0
        %985 = vmatprep.subr.mxu0 0.0
        %986 = vmatpush1.msra.mxu0 0.0
        %987 = vmatprep.subr.mxu0 0.0
        %988 = vmatpush1.msra.mxu0 0.0
        %989 = vmatprep.subr.mxu0 0.0
        %990 = vmatpush1.msra.mxu0 0.0
        %991 = vmatprep.subr.mxu0 0.0
        %992 = vmatpush1.msra.mxu0 0.0
        %993 = vmatprep.subr.mxu0 0.0
        %994 = vmatpush1.msra.mxu0 0.0
        %995 = vmatprep.subr.mxu0 0.0
        %996 = vmatpush1.msra.mxu0 0.0
        %997 = vmatprep.subr.mxu0 0.0
        %998 = vmatpush1.msra.mxu0 0.0
        %999 = vmatprep.subr.mxu0 0.0
        %1000 = vmatpush1.msra.mxu0 0.0
        %1001 = vmatprep.subr.mxu0 0.0
        %1002 = vmatpush1.msra.mxu0 0.0
        %1003 = vmatprep.subr.mxu0 0.0
        %1004 = vmatpush1.msra.mxu0 0.0
        %1005 = vmatprep.subr.mxu0 0.0
        %1006 = vmatpush1.msra.mxu0 0.0
        %1007 = vmatprep.mubr.f32.mxu0 0.0
        %v1008 = vand.u32 %v604, 4294901760
        %1009 = vmatmul.mubr.f32.gmra.mrb[0].mxu0 %v1008
        %v1010 = vpop.f32.mrb[0].mxu0
        %v1011 = vadd.f32 %v929, %v1010
        %v1012 = vpop.f32.mrb[0].mxu0
        %1013 = vmatprep.mubr.f32.mxu0 0.0
        %v1014 = vand.u32 %v607, 4294901760
        %1015 = vmatmul.mubr.f32.gmra.mrb[0].mxu0 %v1014
        %v1016 = vpop.f32.mrb[0].mxu0
        %v1017 = vadd.f32 %v937, %v1016
        %v1018 = vpop.f32.mrb[0].mxu0
        %1019 = vdwg.mxu0
        %1020 = vmatprep.subr.mxu0 0.0
        %v1021 = vand.u32 %v602, 4294901760
        %1022 = vmatpush1.msra.mxu0 %v1021
        %1023 = vmatprep.subr.mxu0 0.0
        %1024 = vmatpush1.msra.mxu0 0.0
        %1025 = vmatprep.subr.mxu0 0.0
        %1026 = vmatpush1.msra.mxu0 0.0
        %1027 = vmatprep.subr.mxu0 0.0
        %1028 = vmatpush1.msra.mxu0 0.0
        %1029 = vmatprep.subr.mxu0 0.0
        %1030 = vmatpush1.msra.mxu0 0.0
        %1031 = vmatprep.subr.mxu0 0.0
        %1032 = vmatpush1.msra.mxu0 0.0
        %1033 = vmatprep.subr.mxu0 0.0
        %1034 = vmatpush1.msra.mxu0 0.0
        %1035 = vmatprep.subr.mxu0 0.0
        %1036 = vmatpush1.msra.mxu0 0.0
        %1037 = vmatprep.subr.mxu0 0.0
        %1038 = vmatpush1.msra.mxu0 0.0
        %1039 = vmatprep.subr.mxu0 0.0
        %1040 = vmatpush1.msra.mxu0 0.0
        %1041 = vmatprep.subr.mxu0 0.0
        %1042 = vmatpush1.msra.mxu0 0.0
        %1043 = vmatprep.subr.mxu0 0.0
        %1044 = vmatpush1.msra.mxu0 0.0
        %1045 = vmatprep.subr.mxu0 0.0
        %1046 = vmatpush1.msra.mxu0 0.0
        %1047 = vmatprep.subr.mxu0 0.0
        %1048 = vmatpush1.msra.mxu0 0.0
        %1049 = vmatprep.subr.mxu0 0.0
        %1050 = vmatpush1.msra.mxu0 0.0
        %1051 = vmatprep.subr.mxu0 0.0
        %1052 = vmatpush1.msra.mxu0 0.0
        %1053 = vmatprep.subr.mxu0 0.0
        %1054 = vmatpush1.msra.mxu0 0.0
        %1055 = vmatprep.subr.mxu0 0.0
        %1056 = vmatpush1.msra.mxu0 0.0
        %1057 = vmatprep.subr.mxu0 0.0
        %1058 = vmatpush1.msra.mxu0 0.0
        %1059 = vmatprep.subr.mxu0 0.0
        %1060 = vmatpush1.msra.mxu0 0.0
        %1061 = vmatprep.subr.mxu0 0.0
        %1062 = vmatpush1.msra.mxu0 0.0
        %1063 = vmatprep.subr.mxu0 0.0
        %1064 = vmatpush1.msra.mxu0 0.0
        %1065 = vmatprep.subr.mxu0 0.0
        %1066 = vmatpush1.msra.mxu0 0.0
        %1067 = vmatprep.subr.mxu0 0.0
        %1068 = vmatpush1.msra.mxu0 0.0
        %1069 = vmatprep.subr.mxu0 0.0
        %1070 = vmatpush1.msra.mxu0 0.0
        %1071 = vmatprep.subr.mxu0 0.0
        %1072 = vmatpush1.msra.mxu0 0.0
        %1073 = vmatprep.subr.mxu0 0.0
        %1074 = vmatpush1.msra.mxu0 0.0
        %1075 = vmatprep.subr.mxu0 0.0
        %1076 = vmatpush1.msra.mxu0 0.0
        %1077 = vmatprep.subr.mxu0 0.0
        %1078 = vmatpush1.msra.mxu0 0.0
        %1079 = vmatprep.subr.mxu0 0.0
        %1080 = vmatpush1.msra.mxu0 0.0
        %1081 = vmatprep.subr.mxu0 0.0
        %1082 = vmatpush1.msra.mxu0 0.0
        %1083 = vmatprep.subr.mxu0 0.0
        %1084 = vmatpush1.msra.mxu0 0.0
        %1085 = vmatprep.mubr.f32.mxu0 0.0
        %v1086 = vand.u32 %v604, 4294901760
        %1087 = vmatmul.mubr.f32.gmra.mrb[0].mxu0 %v1086
        %v1088 = vpop.f32.mrb[0].mxu0
        %v1089 = vadd.f32 %v1011, %v1088
        %v1090 = vpop.f32.mrb[0].mxu0
        %1091 = vmatprep.mubr.f32.mxu0 0.0
        %v1092 = vand.u32 %v607, 4294901760
        %1093 = vmatmul.mubr.f32.gmra.mrb[0].mxu0 %v1092
        %v1094 = vpop.f32.mrb[0].mxu0
        %v1095 = vadd.f32 %v1017, %v1094
        %v1096 = vpop.f32.mrb[0].mxu0
        %1097 = vdwg.mxu0
        %v1099 = vsel %vm193, %v485, 0
        %v1102 = vsel %vm193, %v486, 0
        %1104 = vmatprep.subr.mxu0 0.0
        %v1105 = vand.u32 %v602, 4294901760
        %1106 = vmatpush1.msra.mxu0 %v1105
        %1107 = vmatprep.subr.mxu0 0.0
        %1108 = vmatpush1.msra.mxu0 0.0
        %1109 = vmatprep.subr.mxu0 0.0
        %1110 = vmatpush1.msra.mxu0 0.0
        %1111 = vmatprep.subr.mxu0 0.0
        %1112 = vmatpush1.msra.mxu0 0.0
        %1113 = vmatprep.subr.mxu0 0.0
        %1114 = vmatpush1.msra.mxu0 0.0
        %1115 = vmatprep.subr.mxu0 0.0
        %1116 = vmatpush1.msra.mxu0 0.0
        %1117 = vmatprep.subr.mxu0 0.0
        %1118 = vmatpush1.msra.mxu0 0.0
        %1119 = vmatprep.subr.mxu0 0.0
        %1120 = vmatpush1.msra.mxu0 0.0
        %1121 = vmatprep.subr.mxu0 0.0
        %1122 = vmatpush1.msra.mxu0 0.0
        %1123 = vmatprep.subr.mxu0 0.0
        %1124 = vmatpush1.msra.mxu0 0.0
        %1125 = vmatprep.subr.mxu0 0.0
        %1126 = vmatpush1.msra.mxu0 0.0
        %1127 = vmatprep.subr.mxu0 0.0
        %1128 = vmatpush1.msra.mxu0 0.0
        %1129 = vmatprep.subr.mxu0 0.0
        %1130 = vmatpush1.msra.mxu0 0.0
        %1131 = vmatprep.subr.mxu0 0.0
        %1132 = vmatpush1.msra.mxu0 0.0
        %1133 = vmatprep.subr.mxu0 0.0
        %1134 = vmatpush1.msra.mxu0 0.0
        %1135 = vmatprep.subr.mxu0 0.0
        %1136 = vmatpush1.msra.mxu0 0.0
        %1137 = vmatprep.subr.mxu0 0.0
        %1138 = vmatpush1.msra.mxu0 0.0
        %1139 = vmatprep.subr.mxu0 0.0
        %1140 = vmatpush1.msra.mxu0 0.0
        %1141 = vmatprep.subr.mxu0 0.0
        %1142 = vmatpush1.msra.mxu0 0.0
        %1143 = vmatprep.subr.mxu0 0.0
        %1144 = vmatpush1.msra.mxu0 0.0
        %1145 = vmatprep.subr.mxu0 0.0
        %1146 = vmatpush1.msra.mxu0 0.0
        %1147 = vmatprep.subr.mxu0 0.0
        %1148 = vmatpush1.msra.mxu0 0.0
        %1149 = vmatprep.subr.mxu0 0.0
        %1150 = vmatpush1.msra.mxu0 0.0
        %1151 = vmatprep.subr.mxu0 0.0
        %1152 = vmatpush1.msra.mxu0 0.0
        %1153 = vmatprep.subr.mxu0 0.0
        %1154 = vmatpush1.msra.mxu0 0.0
        %1155 = vmatprep.subr.mxu0 0.0
        %1156 = vmatpush1.msra.mxu0 0.0
        %1157 = vmatprep.subr.mxu0 0.0
        %1158 = vmatpush1.msra.mxu0 0.0
        %1159 = vmatprep.subr.mxu0 0.0
        %1160 = vmatpush1.msra.mxu0 0.0
        %1161 = vmatprep.subr.mxu0 0.0
        %1162 = vmatpush1.msra.mxu0 0.0
        %1163 = vmatprep.subr.mxu0 0.0
        %1164 = vmatpush1.msra.mxu0 0.0
        %1165 = vmatprep.subr.mxu0 0.0
        %1166 = vmatpush1.msra.mxu0 0.0
        %1167 = vmatprep.subr.mxu0 0.0
        %1168 = vmatpush1.msra.mxu0 0.0
        %1169 = vmatprep.mubr.f32.mxu0 0.0
        %v1170 = vand.u32 %v1099, 4294901760
        %v1171 = vsub.f32 %v1099, %v1170
        %v1172 = vand.u32 %v1171, 4294901760
        %v1173 = vsub.f32 %v1171, %v1172
        %v1174 = vand.u32 %v1173, 4294901760
        %1175 = vmatmul.mubr.f32.gmra.mrb[0].mxu0 %v1174
        %v1176 = vpop.f32.mrb[0].mxu0
        %v1177 = vadd.f32 0.0, %v1176
        %v1178 = vpop.f32.mrb[0].mxu0
        %1179 = vmatprep.mubr.f32.mxu0 0.0
        %v1180 = vand.u32 %v1102, 4294901760
        %v1181 = vsub.f32 %v1102, %v1180
        %v1182 = vand.u32 %v1181, 4294901760
        %v1183 = vsub.f32 %v1181, %v1182
        %v1184 = vand.u32 %v1183, 4294901760
        %1185 = vmatmul.mubr.f32.gmra.mrb[0].mxu0 %v1184
        %v1186 = vpop.f32.mrb[0].mxu0
        %v1187 = vadd.f32 0.0, %v1186
        %v1188 = vpop.f32.mrb[0].mxu0
        %1189 = vdwg.mxu0
        %1190 = vmatprep.subr.mxu0 0.0
        %v1191 = vand.u32 %v602, 4294901760
        %v1192 = vsub.f32 %v602, %v1191
        %v1193 = vand.u32 %v1192, 4294901760
        %v1194 = vsub.f32 %v1192, %v1193
        %v1195 = vand.u32 %v1194, 4294901760
        %1196 = vmatpush1.msra.mxu0 %v1195
        %1197 = vmatprep.subr.mxu0 0.0
        %1198 = vmatpush1.msra.mxu0 0.0
        %1199 = vmatprep.subr.mxu0 0.0
        %1200 = vmatpush1.msra.mxu0 0.0
        %1201 = vmatprep.subr.mxu0 0.0
        %1202 = vmatpush1.msra.mxu0 0.0
        %1203 = vmatprep.subr.mxu0 0.0
        %1204 = vmatpush1.msra.mxu0 0.0
        %1205 = vmatprep.subr.mxu0 0.0
        %1206 = vmatpush1.msra.mxu0 0.0
        %1207 = vmatprep.subr.mxu0 0.0
        %1208 = vmatpush1.msra.mxu0 0.0
        %1209 = vmatprep.subr.mxu0 0.0
        %1210 = vmatpush1.msra.mxu0 0.0
        %1211 = vmatprep.subr.mxu0 0.0
        %1212 = vmatpush1.msra.mxu0 0.0
        %1213 = vmatprep.subr.mxu0 0.0
        %1214 = vmatpush1.msra.mxu0 0.0
        %1215 = vmatprep.subr.mxu0 0.0
        %1216 = vmatpush1.msra.mxu0 0.0
        %1217 = vmatprep.subr.mxu0 0.0
        %1218 = vmatpush1.msra.mxu0 0.0
        %1219 = vmatprep.subr.mxu0 0.0
        %1220 = vmatpush1.msra.mxu0 0.0
        %1221 = vmatprep.subr.mxu0 0.0
        %1222 = vmatpush1.msra.mxu0 0.0
        %1223 = vmatprep.subr.mxu0 0.0
        %1224 = vmatpush1.msra.mxu0 0.0
        %1225 = vmatprep.subr.mxu0 0.0
        %1226 = vmatpush1.msra.mxu0 0.0
        %1227 = vmatprep.subr.mxu0 0.0
        %1228 = vmatpush1.msra.mxu0 0.0
        %1229 = vmatprep.subr.mxu0 0.0
        %1230 = vmatpush1.msra.mxu0 0.0
        %1231 = vmatprep.subr.mxu0 0.0
        %1232 = vmatpush1.msra.mxu0 0.0
        %1233 = vmatprep.subr.mxu0 0.0
        %1234 = vmatpush1.msra.mxu0 0.0
        %1235 = vmatprep.subr.mxu0 0.0
        %1236 = vmatpush1.msra.mxu0 0.0
        %1237 = vmatprep.subr.mxu0 0.0
        %1238 = vmatpush1.msra.mxu0 0.0
        %1239 = vmatprep.subr.mxu0 0.0
        %1240 = vmatpush1.msra.mxu0 0.0
        %1241 = vmatprep.subr.mxu0 0.0
        %1242 = vmatpush1.msra.mxu0 0.0
        %1243 = vmatprep.subr.mxu0 0.0
        %1244 = vmatpush1.msra.mxu0 0.0
        %1245 = vmatprep.subr.mxu0 0.0
        %1246 = vmatpush1.msra.mxu0 0.0
        %1247 = vmatprep.subr.mxu0 0.0
        %1248 = vmatpush1.msra.mxu0 0.0
        %1249 = vmatprep.subr.mxu0 0.0
        %1250 = vmatpush1.msra.mxu0 0.0
        %1251 = vmatprep.subr.mxu0 0.0
        %1252 = vmatpush1.msra.mxu0 0.0
        %1253 = vmatprep.subr.mxu0 0.0
        %1254 = vmatpush1.msra.mxu0 0.0
        %1255 = vmatprep.subr.mxu0 0.0
        %1256 = vmatpush1.msra.mxu0 0.0
        %1257 = vmatprep.subr.mxu0 0.0
        %1258 = vmatpush1.msra.mxu0 0.0
        %1259 = vmatprep.mubr.f32.mxu0 0.0
        %v1260 = vand.u32 %v1099, 4294901760
        %1261 = vmatmul.mubr.f32.gmra.mrb[0].mxu0 %v1260
        %v1262 = vpop.f32.mrb[0].mxu0
        %v1263 = vadd.f32 %v1177, %v1262
        %v1264 = vpop.f32.mrb[0].mxu0
        %1265 = vmatprep.mubr.f32.mxu0 0.0
        %v1266 = vand.u32 %v1102, 4294901760
        %1267 = vmatmul.mubr.f32.gmra.mrb[0].mxu0 %v1266
        %v1268 = vpop.f32.mrb[0].mxu0
        %v1269 = vadd.f32 %v1187, %v1268
        %v1270 = vpop.f32.mrb[0].mxu0
        %1271 = vdwg.mxu0
        %1272 = vmatprep.subr.mxu0 0.0
        %v1273 = vand.u32 %v602, 4294901760
        %v1274 = vsub.f32 %v602, %v1273
        %1275 = vmatpush1.msra.mxu0 %v1274
        %1276 = vmatprep.subr.mxu0 0.0
        %1277 = vmatpush1.msra.mxu0 0.0
        %1278 = vmatprep.subr.mxu0 0.0
        %1279 = vmatpush1.msra.mxu0 0.0
        %1280 = vmatprep.subr.mxu0 0.0
        %1281 = vmatpush1.msra.mxu0 0.0
        %1282 = vmatprep.subr.mxu0 0.0
        %1283 = vmatpush1.msra.mxu0 0.0
        %1284 = vmatprep.subr.mxu0 0.0
        %1285 = vmatpush1.msra.mxu0 0.0
        %1286 = vmatprep.subr.mxu0 0.0
        %1287 = vmatpush1.msra.mxu0 0.0
        %1288 = vmatprep.subr.mxu0 0.0
        %1289 = vmatpush1.msra.mxu0 0.0
        %1290 = vmatprep.subr.mxu0 0.0
        %1291 = vmatpush1.msra.mxu0 0.0
        %1292 = vmatprep.subr.mxu0 0.0
        %1293 = vmatpush1.msra.mxu0 0.0
        %1294 = vmatprep.subr.mxu0 0.0
        %1295 = vmatpush1.msra.mxu0 0.0
        %1296 = vmatprep.subr.mxu0 0.0
        %1297 = vmatpush1.msra.mxu0 0.0
        %1298 = vmatprep.subr.mxu0 0.0
        %1299 = vmatpush1.msra.mxu0 0.0
        %1300 = vmatprep.subr.mxu0 0.0
        %1301 = vmatpush1.msra.mxu0 0.0
        %1302 = vmatprep.subr.mxu0 0.0
        %1303 = vmatpush1.msra.mxu0 0.0
        %1304 = vmatprep.subr.mxu0 0.0
        %1305 = vmatpush1.msra.mxu0 0.0
        %1306 = vmatprep.subr.mxu0 0.0
        %1307 = vmatpush1.msra.mxu0 0.0
        %1308 = vmatprep.subr.mxu0 0.0
        %1309 = vmatpush1.msra.mxu0 0.0
        %1310 = vmatprep.subr.mxu0 0.0
        %1311 = vmatpush1.msra.mxu0 0.0
        %1312 = vmatprep.subr.mxu0 0.0
        %1313 = vmatpush1.msra.mxu0 0.0
        %1314 = vmatprep.subr.mxu0 0.0
        %1315 = vmatpush1.msra.mxu0 0.0
        %1316 = vmatprep.subr.mxu0 0.0
        %1317 = vmatpush1.msra.mxu0 0.0
        %1318 = vmatprep.subr.mxu0 0.0
        %1319 = vmatpush1.msra.mxu0 0.0
        %1320 = vmatprep.subr.mxu0 0.0
        %1321 = vmatpush1.msra.mxu0 0.0
        %1322 = vmatprep.subr.mxu0 0.0
        %1323 = vmatpush1.msra.mxu0 0.0
        %1324 = vmatprep.subr.mxu0 0.0
        %1325 = vmatpush1.msra.mxu0 0.0
        %1326 = vmatprep.subr.mxu0 0.0
        %1327 = vmatpush1.msra.mxu0 0.0
        %1328 = vmatprep.subr.mxu0 0.0
        %1329 = vmatpush1.msra.mxu0 0.0
        %1330 = vmatprep.subr.mxu0 0.0
        %1331 = vmatpush1.msra.mxu0 0.0
        %1332 = vmatprep.subr.mxu0 0.0
        %1333 = vmatpush1.msra.mxu0 0.0
        %1334 = vmatprep.subr.mxu0 0.0
        %1335 = vmatpush1.msra.mxu0 0.0
        %1336 = vmatprep.subr.mxu0 0.0
        %1337 = vmatpush1.msra.mxu0 0.0
        %1338 = vmatprep.mubr.f32.mxu0 0.0
        %v1339 = vand.u32 %v1099, 4294901760
        %v1340 = vsub.f32 %v1099, %v1339
        %1341 = vmatmul.mubr.f32.gmra.mrb[0].mxu0 %v1340
        %v1342 = vpop.f32.mrb[0].mxu0
        %v1343 = vadd.f32 %v1263, %v1342
        %v1344 = vpop.f32.mrb[0].mxu0
        %1345 = vmatprep.mubr.f32.mxu0 0.0
        %v1346 = vand.u32 %v1102, 4294901760
        %v1347 = vsub.f32 %v1102, %v1346
        %1348 = vmatmul.mubr.f32.gmra.mrb[0].mxu0 %v1347
        %v1349 = vpop.f32.mrb[0].mxu0
        %v1350 = vadd.f32 %v1269, %v1349
        %v1351 = vpop.f32.mrb[0].mxu0
        %1352 = vdwg.mxu0
        %1353 = vmatprep.subr.mxu0 0.0
        %v1354 = vand.u32 %v602, 4294901760
        %1355 = vmatpush1.msra.mxu0 %v1354
        %1356 = vmatprep.subr.mxu0 0.0
        %1357 = vmatpush1.msra.mxu0 0.0
        %1358 = vmatprep.subr.mxu0 0.0
        %1359 = vmatpush1.msra.mxu0 0.0
        %1360 = vmatprep.subr.mxu0 0.0
        %1361 = vmatpush1.msra.mxu0 0.0
        %1362 = vmatprep.subr.mxu0 0.0
        %1363 = vmatpush1.msra.mxu0 0.0
        %1364 = vmatprep.subr.mxu0 0.0
        %1365 = vmatpush1.msra.mxu0 0.0
        %1366 = vmatprep.subr.mxu0 0.0
        %1367 = vmatpush1.msra.mxu0 0.0
        %1368 = vmatprep.subr.mxu0 0.0
        %1369 = vmatpush1.msra.mxu0 0.0
        %1370 = vmatprep.subr.mxu0 0.0
        %1371 = vmatpush1.msra.mxu0 0.0
        %1372 = vmatprep.subr.mxu0 0.0
        %1373 = vmatpush1.msra.mxu0 0.0
        %1374 = vmatprep.subr.mxu0 0.0
        %1375 = vmatpush1.msra.mxu0 0.0
        %1376 = vmatprep.subr.mxu0 0.0
        %1377 = vmatpush1.msra.mxu0 0.0
        %1378 = vmatprep.subr.mxu0 0.0
        %1379 = vmatpush1.msra.mxu0 0.0
        %1380 = vmatprep.subr.mxu0 0.0
        %1381 = vmatpush1.msra.mxu0 0.0
        %1382 = vmatprep.subr.mxu0 0.0
        %1383 = vmatpush1.msra.mxu0 0.0
        %1384 = vmatprep.subr.mxu0 0.0
        %1385 = vmatpush1.msra.mxu0 0.0
        %1386 = vmatprep.subr.mxu0 0.0
        %1387 = vmatpush1.msra.mxu0 0.0
        %1388 = vmatprep.subr.mxu0 0.0
        %1389 = vmatpush1.msra.mxu0 0.0
        %1390 = vmatprep.subr.mxu0 0.0
        %1391 = vmatpush1.msra.mxu0 0.0
        %1392 = vmatprep.subr.mxu0 0.0
        %1393 = vmatpush1.msra.mxu0 0.0
        %1394 = vmatprep.subr.mxu0 0.0
        %1395 = vmatpush1.msra.mxu0 0.0
        %1396 = vmatprep.subr.mxu0 0.0
        %1397 = vmatpush1.msra.mxu0 0.0
        %1398 = vmatprep.subr.mxu0 0.0
        %1399 = vmatpush1.msra.mxu0 0.0
        %1400 = vmatprep.subr.mxu0 0.0
        %1401 = vmatpush1.msra.mxu0 0.0
        %1402 = vmatprep.subr.mxu0 0.0
        %1403 = vmatpush1.msra.mxu0 0.0
        %1404 = vmatprep.subr.mxu0 0.0
        %1405 = vmatpush1.msra.mxu0 0.0
        %1406 = vmatprep.subr.mxu0 0.0
        %1407 = vmatpush1.msra.mxu0 0.0
        %1408 = vmatprep.subr.mxu0 0.0
        %1409 = vmatpush1.msra.mxu0 0.0
        %1410 = vmatprep.subr.mxu0 0.0
        %1411 = vmatpush1.msra.mxu0 0.0
        %1412 = vmatprep.subr.mxu0 0.0
        %1413 = vmatpush1.msra.mxu0 0.0
        %1414 = vmatprep.subr.mxu0 0.0
        %1415 = vmatpush1.msra.mxu0 0.0
        %1416 = vmatprep.subr.mxu0 0.0
        %1417 = vmatpush1.msra.mxu0 0.0
        %1418 = vmatprep.mubr.f32.mxu0 0.0
        %v1419 = vand.u32 %v1099, 4294901760
        %v1420 = vsub.f32 %v1099, %v1419
        %v1421 = vand.u32 %v1420, 4294901760
        %1422 = vmatmul.mubr.f32.gmra.mrb[0].mxu0 %v1421
        %v1423 = vpop.f32.mrb[0].mxu0
        %v1424 = vadd.f32 %v1343, %v1423
        %v1425 = vpop.f32.mrb[0].mxu0
        %1426 = vmatprep.mubr.f32.mxu0 0.0
        %v1427 = vand.u32 %v1102, 4294901760
        %v1428 = vsub.f32 %v1102, %v1427
        %v1429 = vand.u32 %v1428, 4294901760
        %1430 = vmatmul.mubr.f32.gmra.mrb[0].mxu0 %v1429
        %v1431 = vpop.f32.mrb[0].mxu0
        %v1432 = vadd.f32 %v1350, %v1431
        %v1433 = vpop.f32.mrb[0].mxu0
        %1434 = vdwg.mxu0
        %1435 = vmatprep.subr.mxu0 0.0
        %v1436 = vand.u32 %v602, 4294901760
        %v1437 = vsub.f32 %v602, %v1436
        %v1438 = vand.u32 %v1437, 4294901760
        %1439 = vmatpush1.msra.mxu0 %v1438
        %1440 = vmatprep.subr.mxu0 0.0
        %1441 = vmatpush1.msra.mxu0 0.0
        %1442 = vmatprep.subr.mxu0 0.0
        %1443 = vmatpush1.msra.mxu0 0.0
        %1444 = vmatprep.subr.mxu0 0.0
        %1445 = vmatpush1.msra.mxu0 0.0
        %1446 = vmatprep.subr.mxu0 0.0
        %1447 = vmatpush1.msra.mxu0 0.0
        %1448 = vmatprep.subr.mxu0 0.0
        %1449 = vmatpush1.msra.mxu0 0.0
        %1450 = vmatprep.subr.mxu0 0.0
        %1451 = vmatpush1.msra.mxu0 0.0
        %1452 = vmatprep.subr.mxu0 0.0
        %1453 = vmatpush1.msra.mxu0 0.0
        %1454 = vmatprep.subr.mxu0 0.0
        %1455 = vmatpush1.msra.mxu0 0.0
        %1456 = vmatprep.subr.mxu0 0.0
        %1457 = vmatpush1.msra.mxu0 0.0
        %1458 = vmatprep.subr.mxu0 0.0
        %1459 = vmatpush1.msra.mxu0 0.0
        %1460 = vmatprep.subr.mxu0 0.0
        %1461 = vmatpush1.msra.mxu0 0.0
        %1462 = vmatprep.subr.mxu0 0.0
        %1463 = vmatpush1.msra.mxu0 0.0
        %1464 = vmatprep.subr.mxu0 0.0
        %1465 = vmatpush1.msra.mxu0 0.0
        %1466 = vmatprep.subr.mxu0 0.0
        %1467 = vmatpush1.msra.mxu0 0.0
        %1468 = vmatprep.subr.mxu0 0.0
        %1469 = vmatpush1.msra.mxu0 0.0
        %1470 = vmatprep.subr.mxu0 0.0
        %1471 = vmatpush1.msra.mxu0 0.0
        %1472 = vmatprep.subr.mxu0 0.0
        %1473 = vmatpush1.msra.mxu0 0.0
        %1474 = vmatprep.subr.mxu0 0.0
        %1475 = vmatpush1.msra.mxu0 0.0
        %1476 = vmatprep.subr.mxu0 0.0
        %1477 = vmatpush1.msra.mxu0 0.0
        %1478 = vmatprep.subr.mxu0 0.0
        %1479 = vmatpush1.msra.mxu0 0.0
        %1480 = vmatprep.subr.mxu0 0.0
        %1481 = vmatpush1.msra.mxu0 0.0
        %1482 = vmatprep.subr.mxu0 0.0
        %1483 = vmatpush1.msra.mxu0 0.0
        %1484 = vmatprep.subr.mxu0 0.0
        %1485 = vmatpush1.msra.mxu0 0.0
        %1486 = vmatprep.subr.mxu0 0.0
        %1487 = vmatpush1.msra.mxu0 0.0
        %1488 = vmatprep.subr.mxu0 0.0
        %1489 = vmatpush1.msra.mxu0 0.0
        %1490 = vmatprep.subr.mxu0 0.0
        %1491 = vmatpush1.msra.mxu0 0.0
        %1492 = vmatprep.subr.mxu0 0.0
        %1493 = vmatpush1.msra.mxu0 0.0
        %1494 = vmatprep.subr.mxu0 0.0
        %1495 = vmatpush1.msra.mxu0 0.0
        %1496 = vmatprep.subr.mxu0 0.0
        %1497 = vmatpush1.msra.mxu0 0.0
        %1498 = vmatprep.subr.mxu0 0.0
        %1499 = vmatpush1.msra.mxu0 0.0
        %1500 = vmatprep.subr.mxu0 0.0
        %1501 = vmatpush1.msra.mxu0 0.0
        %1502 = vmatprep.mubr.f32.mxu0 0.0
        %v1503 = vand.u32 %v1099, 4294901760
        %1504 = vmatmul.mubr.f32.gmra.mrb[0].mxu0 %v1503
        %v1505 = vpop.f32.mrb[0].mxu0
        %v1506 = vadd.f32 %v1424, %v1505
        %v1507 = vpop.f32.mrb[0].mxu0
        %1508 = vmatprep.mubr.f32.mxu0 0.0
        %v1509 = vand.u32 %v1102, 4294901760
        %1510 = vmatmul.mubr.f32.gmra.mrb[0].mxu0 %v1509
        %v1511 = vpop.f32.mrb[0].mxu0
        %v1512 = vadd.f32 %v1432, %v1511
        %v1513 = vpop.f32.mrb[0].mxu0
        %1514 = vdwg.mxu0
        %1515 = vmatprep.subr.mxu0 0.0
        %v1516 = vand.u32 %v602, 4294901760
        %1517 = vmatpush1.msra.mxu0 %v1516
        %1518 = vmatprep.subr.mxu0 0.0
        %1519 = vmatpush1.msra.mxu0 0.0
        %1520 = vmatprep.subr.mxu0 0.0
        %1521 = vmatpush1.msra.mxu0 0.0
        %1522 = vmatprep.subr.mxu0 0.0
        %1523 = vmatpush1.msra.mxu0 0.0
        %1524 = vmatprep.subr.mxu0 0.0
        %1525 = vmatpush1.msra.mxu0 0.0
        %1526 = vmatprep.subr.mxu0 0.0
        %1527 = vmatpush1.msra.mxu0 0.0
        %1528 = vmatprep.subr.mxu0 0.0
        %1529 = vmatpush1.msra.mxu0 0.0
        %1530 = vmatprep.subr.mxu0 0.0
        %1531 = vmatpush1.msra.mxu0 0.0
        %1532 = vmatprep.subr.mxu0 0.0
        %1533 = vmatpush1.msra.mxu0 0.0
        %1534 = vmatprep.subr.mxu0 0.0
        %1535 = vmatpush1.msra.mxu0 0.0
        %1536 = vmatprep.subr.mxu0 0.0
        %1537 = vmatpush1.msra.mxu0 0.0
        %1538 = vmatprep.subr.mxu0 0.0
        %1539 = vmatpush1.msra.mxu0 0.0
        %1540 = vmatprep.subr.mxu0 0.0
        %1541 = vmatpush1.msra.mxu0 0.0
        %1542 = vmatprep.subr.mxu0 0.0
        %1543 = vmatpush1.msra.mxu0 0.0
        %1544 = vmatprep.subr.mxu0 0.0
        %1545 = vmatpush1.msra.mxu0 0.0
        %1546 = vmatprep.subr.mxu0 0.0
        %1547 = vmatpush1.msra.mxu0 0.0
        %1548 = vmatprep.subr.mxu0 0.0
        %1549 = vmatpush1.msra.mxu0 0.0
        %1550 = vmatprep.subr.mxu0 0.0
        %1551 = vmatpush1.msra.mxu0 0.0
        %1552 = vmatprep.subr.mxu0 0.0
        %1553 = vmatpush1.msra.mxu0 0.0
        %1554 = vmatprep.subr.mxu0 0.0
        %1555 = vmatpush1.msra.mxu0 0.0
        %1556 = vmatprep.subr.mxu0 0.0
        %1557 = vmatpush1.msra.mxu0 0.0
        %1558 = vmatprep.subr.mxu0 0.0
        %1559 = vmatpush1.msra.mxu0 0.0
        %1560 = vmatprep.subr.mxu0 0.0
        %1561 = vmatpush1.msra.mxu0 0.0
        %1562 = vmatprep.subr.mxu0 0.0
        %1563 = vmatpush1.msra.mxu0 0.0
        %1564 = vmatprep.subr.mxu0 0.0
        %1565 = vmatpush1.msra.mxu0 0.0
        %1566 = vmatprep.subr.mxu0 0.0
        %1567 = vmatpush1.msra.mxu0 0.0
        %1568 = vmatprep.subr.mxu0 0.0
        %1569 = vmatpush1.msra.mxu0 0.0
        %1570 = vmatprep.subr.mxu0 0.0
        %1571 = vmatpush1.msra.mxu0 0.0
        %1572 = vmatprep.subr.mxu0 0.0
        %1573 = vmatpush1.msra.mxu0 0.0
        %1574 = vmatprep.subr.mxu0 0.0
        %1575 = vmatpush1.msra.mxu0 0.0
        %1576 = vmatprep.subr.mxu0 0.0
        %1577 = vmatpush1.msra.mxu0 0.0
        %1578 = vmatprep.subr.mxu0 0.0
        %1579 = vmatpush1.msra.mxu0 0.0
        %1580 = vmatprep.mubr.f32.mxu0 0.0
        %v1581 = vand.u32 %v1099, 4294901760
        %1582 = vmatmul.mubr.f32.gmra.mrb[0].mxu0 %v1581
        %v1583 = vpop.f32.mrb[0].mxu0
        %v1584 = vadd.f32 %v1506, %v1583
        %v1585 = vpop.f32.mrb[0].mxu0
        %1586 = vmatprep.mubr.f32.mxu0 0.0
        %v1587 = vand.u32 %v1102, 4294901760
        %1588 = vmatmul.mubr.f32.gmra.mrb[0].mxu0 %v1587
        %v1589 = vpop.f32.mrb[0].mxu0
        %v1590 = vadd.f32 %v1512, %v1589
        %v1591 = vpop.f32.mrb[0].mxu0
        %1592 = vdwg.mxu0
        %1594 = vset.pattern.permute.xlu0 1
        %1595 = vperm.xlu0 %1594, %v575
        %v1596 = vpop.permute.xlu0 %1595
        %1599 = vset.pattern.permute.xlu0 1
        %1600 = vperm.xlu0 %1599, %v576
        %v1601 = vpop.permute.xlu0 %1600
        %v1603 = vmul.f32 %v1596, %v487
        %v1604 = vmul.f32 %v1601, %v488
        %1606 = vset.pattern.permute.xlu0 2
        %1607 = vperm.xlu0 %1606, %v589
        %v1608 = vpop.permute.xlu0 %1607
        %1611 = vset.pattern.permute.xlu0 2
        %1612 = vperm.xlu0 %1611, %v590
        %v1613 = vpop.permute.xlu0 %1612
        %v1615 = vadd.f32 %v1603, %v1608
        %v1616 = vadd.f32 %v1604, %v1613
        %v1617 = vmul.f32 %v1615, %v1089
        %v1618 = vmul.f32 %v1616, %v1095
        %v1619 = vadd.f32 %v1617, %v1584
        %v1620 = vadd.f32 %v1618, %v1590
        %1621 = vst.msk [vmem:[%s178] sm:$0xff] %vm489, %v1619
        %1622 = vst.msk [vmem:[%s178 + $0x8] sm:$0xff] %vm489, %v1620
        %s1623 = sand.u32 %s98, 1
        %s1624 = scalar_lea.sflag [#allocation3], %s1623
        %s1625 = sand.u32 %s98, 1
        %s1626 = smul.addr %s1625, 16
        %s1627 = scalar_lea.vmem [#allocation2], %s1626
        // Predicated region
        $region33: #{tpu_custom_call.1} parent=31 // pred_check
          %p1628 = pneg %p108
        $region34: #{tpu_custom_call.1} parent=31 // pred_check_branch
          %1630 = sbr.rel (%p1628) target = $region36
        $region35: #{tpu_custom_call.1} parent=31 // pred_region
          %s1632 = ssub.s32 256, 256
          %1633 = vsyncadd %s1624, %s1632
          %s1634 = smul.addr %s17, 2
          %s1635 = smul.addr %s1634, 128
          %s1636 = scalar_lea.hbm %s3, %s1635
          %s1637 = sshll.u32 %s1627, 4
          %s1638 = int_to_ptr.vmem [resolvable:$true] %s1637
          %1643 = dma.vmem_to_hbm [thread:$0]  %s1638, 256, %s1636, %s1624, 128, 128, 8
        $region36: #{tpu_custom_call.1} parent=31 // pred_fallthru
          _
      $region32: #{tpu_custom_call.1} parent=5 // pred_fallthru
        _
      %p1644 = scmp.le.s32.totalorder 2, %s12
      // Predicated region
      $region37: #{tpu_custom_call.1} parent=5 // pred_check
        %p1645 = pneg %p1644
      $region38: #{tpu_custom_call.1} parent=5 // pred_check_branch
        %1647 = sbr.rel (%p1645) target = $region40
      $region39: #{tpu_custom_call.1} parent=5 // pred_region
        %s1648 = ssub.s32 %s12, 2
        // Predicated region
        $region41: #{tpu_custom_call.1} parent=39 // pred_check
          %p1649 = pneg %p114
        $region42: #{tpu_custom_call.1} parent=39 // pred_check_branch
          %1651 = sbr.rel (%p1649) target = $region44
        $region43: #{tpu_custom_call.1} parent=39 // pred_region
          %s1652 = sand.u32 %s99, 1
          %s1653 = scalar_lea.sflag [#allocation3], %s1652
          %s1654 = sand.u32 %s99, 1
          %s1655 = smul.addr %s1654, 16
          %s1656 = scalar_lea.vmem [#allocation2], %s1655
          %1657 = dma.done %s1653, 256
        $region44: #{tpu_custom_call.1} parent=39 // pred_fallthru
          _
      $region40: #{tpu_custom_call.1} parent=5 // pred_fallthru
        _
    $region6: #{tpu_custom_call.1} parent=1 // loop_footer
      %s16 = sadd.s32 1, %s12
    $region7: #{tpu_custom_call.1} parent=1 // loop_footer_branch
      %11 = sbr.rel target = $region3
    $region8: #{tpu_custom_call.1} parent=1 // loop_exit
      _
    %1658 = vsyncpa [#allocation3], 1
    %s1659 = scalar_lea.sflag [#allocation3], 1
    %1660 = vsyncpa %s1659, 1

</llo_original>
